<compile_context>
chip_gen: v7x
topology: tpu7x:2x2x1
jax: 0.10.0
libtpu: 0.0.40
codegen_flags: <defaults>
</compile_context>

<pallas_src>
import jax
import jax.numpy as jnp
from jax import lax
from jax.experimental import pallas as pl
from jax.experimental.pallas import tpu as pltpu


def _lstm_last_kernel(x_ref, wih_ref, whh_ref, b_ref, out_ref, xw_ref):
    """LSTM recurrence over T steps; writes only the final hidden state.

    x_ref  : (B*T, I)    flattened input, row b*T + t holds x[b, t, :]
    wih_ref: (I, 4H)     input->gates weights, columns ordered [i, f, o, g]
    whh_ref: (H, 4H)     hidden->gates weights, columns ordered [i, f, o, g]
    b_ref  : (1, 4H)     b_ih + b_hh, same column order
    out_ref: (B, H)      final hidden state h_T
    xw_ref : (B, T, 4H)  VMEM scratch holding the one-shot input projection
    """
    TB, I = x_ref.shape
    H = whh_ref.shape[0]
    B = out_ref.shape[0]
    T = TB // B
    H4 = 4 * H

    # ---- One-shot input projection for every (b, t) as VPU rank-1 updates
    # (I is tiny -> MXU push/pop latency buys nothing).  Staged into VMEM so
    # the serial loop below does plain loads off the critical chain.
    x = x_ref[...]                                    # (B*T, I)
    wih = wih_ref[...]                                # (I, 4H)
    xw = x[:, 0:1] * wih[0:1, :]                      # (B*T, 4H)
    for d in range(1, I):                             # static unroll
        xw = xw + x[:, d:d + 1] * wih[d:d + 1, :]
    xw_ref[...] = (xw + b_ref[...]).reshape(B, T, H4)

    whh = whh_ref[...]                                # hoisted, reused each step

    h = jnp.zeros((B, H), jnp.float32)
    c = jnp.zeros((B, H), jnp.float32)

    # T is a small static Python int -> fully unrolled, static slicing.
    for t in range(T):
        gates = xw_ref[:, t, :] + jnp.dot(
            h, whh, preferred_element_type=jnp.float32
        )                                             # (B, 4H) = [i, f, o, g]

        sig = jax.nn.sigmoid(gates)                   # one EUP pass over the vreg
        i_g = sig[:, 0 * H:1 * H]
        f_g = sig[:, 1 * H:2 * H]
        o_g = sig[:, 2 * H:3 * H]
        g_g = jnp.tanh(gates[:, 3 * H:])              # one EUP pass (g columns)

        c = f_g * c + i_g * g_g
        h = o_g * jnp.tanh(c)

    out_ref[...] = h.astype(out_ref.dtype)


def prepare_lstm_params(w_ih, w_hh, b_ih, b_hh):
    """One-time parameter prep (call once at init, NOT per forward pass).

    Reorders PyTorch gate rows [i, f, g, o] -> [i, f, o, g] using static
    slices (no gather), transposes weights to (in_dim, 4H) and folds the two
    biases into a single (1, 4H) row.
    """
    H4 = w_ih.shape[0]
    H = H4 // 4

    def reorder(m):
        return jnp.concatenate([m[:2 * H], m[3 * H:], m[2 * H:3 * H]], axis=0)

    wih_t = reorder(w_ih).T                      # (I, 4H)
    whh_t = reorder(w_hh).T                      # (H, 4H)
    bias = reorder(b_ih + b_hh).reshape(1, H4)   # (1, 4H)
    return wih_t, whh_t, bias


def ego_past_encoder(x, wih_t, whh_t, bias, *, batch_block=None):
    """x: (B, T, I) float32; prepared params from prepare_lstm_params.

    Returns (B, H) = h_T of a 1-layer batch_first LSTM (== out[:, -1, :]).

    batch_block: if set (multiple of 8 dividing B), splits the batch over a
    leading "parallel" grid axis so the two TensorCores of v7x each take a
    slice.  Default (None) is a single grid-free invocation.
    """
    B, T, I = x.shape
    H4 = wih_t.shape[1]
    H = H4 // 4

    # Free row-major reshape: row b*T + t holds x[b, t, :].  No transpose.
    x2 = x.reshape(B * T, I)

    if batch_block is None or batch_block >= B:
        return pl.pallas_call(
            _lstm_last_kernel,
            out_shape=jax.ShapeDtypeStruct((B, H), jnp.float32),
            in_specs=[
                pl.BlockSpec(memory_space=pltpu.MemorySpace.VMEM),
                pl.BlockSpec(memory_space=pltpu.MemorySpace.VMEM),
                pl.BlockSpec(memory_space=pltpu.MemorySpace.VMEM),
                pl.BlockSpec(memory_space=pltpu.MemorySpace.VMEM),
            ],
            out_specs=pl.BlockSpec(memory_space=pltpu.MemorySpace.VMEM),
            scratch_shapes=[pltpu.VMEM((B, T, H4), jnp.float32)],
        )(x2, wih_t, whh_t, bias)

    # Batched path: independent batch slices -> parallel grid axis (2 TCs on v7x).
    assert B % batch_block == 0 and batch_block % 8 == 0
    nb = B // batch_block
    return pl.pallas_call(
        _lstm_last_kernel,
        out_shape=jax.ShapeDtypeStruct((B, H), jnp.float32),
        grid=(nb,),
        in_specs=[
            pl.BlockSpec((batch_block * T, I), lambda i: (i, 0)),
            pl.BlockSpec((I, H4), lambda i: (0, 0)),
            pl.BlockSpec((H, H4), lambda i: (0, 0)),
            pl.BlockSpec((1, H4), lambda i: (0, 0)),
        ],
        out_specs=pl.BlockSpec((batch_block, H), lambda i: (i, 0)),
        scratch_shapes=[pltpu.VMEM((batch_block, T, H4), jnp.float32)],
        compiler_params=pltpu.CompilerParams(
            dimension_semantics=("parallel",)
        ),
    )(x2, wih_t, whh_t, bias)


def _reference_lstm_last(x, w_ih, w_hh, b_ih, b_hh):
    """Pure-JAX reference matching torch.nn.LSTM (batch_first, 1 layer)."""
    B, T, I = x.shape
    H = w_hh.shape[1]
    bias = b_ih + b_hh

    def step(carry, x_t):
        h, c = carry
        gates = x_t @ w_ih.T + h @ w_hh.T + bias
        i_g = jax.nn.sigmoid(gates[:, 0 * H:1 * H])
        f_g = jax.nn.sigmoid(gates[:, 1 * H:2 * H])
        g_g = jnp.tanh(gates[:, 2 * H:3 * H])
        o_g = jax.nn.sigmoid(gates[:, 3 * H:4 * H])
        c = f_g * c + i_g * g_g
        h = o_g * jnp.tanh(c)
        return (h, c), None

    h0 = jnp.zeros((B, H), jnp.float32)
    c0 = jnp.zeros((B, H), jnp.float32)
    (h_T, _), _ = lax.scan(step, (h0, c0), jnp.transpose(x, (1, 0, 2)))
    return h_T


if __name__ == "__main__":
    # Small shapes consistent with the module: input_size=2, hidden_size=32.
    # B >= 8 so sublanes are occupied (perf feedback: batch real work).
    B, T, I, H = 8, 8, 2, 32
    key = jax.random.PRNGKey(0)
    kx, kx2, k1, k2, k3, k4 = jax.random.split(key, 6)

    # PyTorch LSTM init: U(-1/sqrt(H), 1/sqrt(H)).
    bound = 1.0 / jnp.sqrt(jnp.float32(H))
    w_ih = jax.random.uniform(k1, (4 * H, I), jnp.float32, -bound, bound)
    w_hh = jax.random.uniform(k2, (4 * H, H), jnp.float32, -bound, bound)
    b_ih = jax.random.uniform(k3, (4 * H,), jnp.float32, -bound, bound)
    b_hh = jax.random.uniform(k4, (4 * H,), jnp.float32, -bound, bound)

    # One-time param prep, hoisted out of the per-call path.
    wih_t, whh_t, bias = prepare_lstm_params(w_ih, w_hh, b_ih, b_hh)

    encoder = jax.jit(ego_past_encoder, static_argnames=("batch_block",))

    # --- Path 1: grid-free single invocation.
    x = jax.random.normal(kx, (B, T, I), jnp.float32)
    out = jax.block_until_ready(encoder(x, wih_t, whh_t, bias))
    ref = _reference_lstm_last(x, w_ih, w_hh, b_ih, b_hh)
    assert out.shape == (B, H)
    assert jnp.allclose(out, ref, atol=2e-5, rtol=2e-5)

    # --- Path 2: larger batch split over a parallel grid axis (v7x 2-TC path;
    # harmless single-TC loop on v5e/v6e).
    B2 = 16
    xb = jax.random.normal(kx2, (B2, T, I), jnp.float32)
    out_b = jax.block_until_ready(
        encoder(xb, wih_t, whh_t, bias, batch_block=8)
    )
    ref_b = _reference_lstm_last(xb, w_ih, w_hh, b_ih, b_hh)
    assert out_b.shape == (B2, H)
    assert jnp.allclose(out_b, ref_b, atol=2e-5, rtol=2e-5)

    print("KERNEL_OK")
</pallas_src>

<mosaic_0001>
module attributes {stable_mosaic.version = 11 : i64} {
  func.func @_lstm_last_kernel(%arg0: memref<64x2xf32, #tpu.memory_space<vmem>>, %arg1: memref<2x128xf32, #tpu.memory_space<vmem>>, %arg2: memref<32x128xf32, #tpu.memory_space<vmem>>, %arg3: memref<1x128xf32, #tpu.memory_space<vmem>>, %arg4: memref<8x32xf32, #tpu.memory_space<vmem>>, %arg5: memref<8x8x128xf32, #tpu.memory_space<vmem>>) attributes {dimension_semantics = [], scalar_prefetch = 0 : i64, scratch_operands = 1 : i64, tpu.core_type = #tpu.core_type<tc>} {
    %c0 = arith.constant 0 : index
    %c0_0 = arith.constant 0 : index
    %0 = vector.load %arg0[%c0, %c0_0] : memref<64x2xf32, #tpu.memory_space<vmem>>, vector<64x2xf32>
    %c0_1 = arith.constant 0 : index
    %c0_2 = arith.constant 0 : index
    %1 = vector.load %arg1[%c0_1, %c0_2] : memref<2x128xf32, #tpu.memory_space<vmem>>, vector<2x128xf32>
    %2 = vector.extract_strided_slice %0 {offsets = [0, 0], sizes = [64, 1], strides = [1, 1]} : vector<64x2xf32> to vector<64x1xf32>
    %3 = vector.extract_strided_slice %1 {offsets = [0, 0], sizes = [1, 128], strides = [1, 1]} : vector<2x128xf32> to vector<1x128xf32>
    %4 = vector.broadcast %2 : vector<64x1xf32> to vector<64x128xf32>
    %5 = vector.broadcast %3 : vector<1x128xf32> to vector<64x128xf32>
    %6 = arith.mulf %4, %5 : vector<64x128xf32>
    %7 = vector.extract_strided_slice %0 {offsets = [0, 1], sizes = [64, 1], strides = [1, 1]} : vector<64x2xf32> to vector<64x1xf32>
    %8 = vector.extract_strided_slice %1 {offsets = [1, 0], sizes = [1, 128], strides = [1, 1]} : vector<2x128xf32> to vector<1x128xf32>
    %9 = vector.broadcast %7 : vector<64x1xf32> to vector<64x128xf32>
    %10 = vector.broadcast %8 : vector<1x128xf32> to vector<64x128xf32>
    %11 = arith.mulf %9, %10 : vector<64x128xf32>
    %12 = arith.addf %6, %11 : vector<64x128xf32>
    %c0_3 = arith.constant 0 : index
    %c0_4 = arith.constant 0 : index
    %13 = vector.load %arg3[%c0_3, %c0_4] : memref<1x128xf32, #tpu.memory_space<vmem>>, vector<1x128xf32>
    %14 = vector.broadcast %13 : vector<1x128xf32> to vector<64x128xf32>
    %15 = arith.addf %12, %14 : vector<64x128xf32>
    %16 = vector.shape_cast %15 : vector<64x128xf32> to vector<8x8x128xf32>
    %c0_5 = arith.constant 0 : index
    %c0_6 = arith.constant 0 : index
    %c0_7 = arith.constant 0 : index
    %17 = vector.load %arg5[%c0_5, %c0_6, %c0_7] : memref<8x8x128xf32, #tpu.memory_space<vmem>>, vector<8x8x128xf32>
    tpu.vector_store %arg5[%c0_5, %c0_6, %c0_7], %16 {strides = array<i32>} : memref<8x8x128xf32, #tpu.memory_space<vmem>>, vector<8x8x128xf32>,
    %c0_8 = arith.constant 0 : index
    %c0_9 = arith.constant 0 : index
    %18 = vector.load %arg2[%c0_8, %c0_9] : memref<32x128xf32, #tpu.memory_space<vmem>>, vector<32x128xf32>
    %cst = arith.constant 0.000000e+00 : f32
    %19 = vector.broadcast %cst : f32 to vector<8x32xf32>
    %cst_10 = arith.constant 0.000000e+00 : f32
    %20 = vector.broadcast %cst_10 : f32 to vector<8x32xf32>
    %c0_11 = arith.constant 0 : index
    %c0_12 = arith.constant 0 : index
    %c0_13 = arith.constant 0 : index
    %21 = vector.load %arg5[%c0_11, %c0_12, %c0_13] : memref<8x8x128xf32, #tpu.memory_space<vmem>>, vector<8x1x128xf32>
    %22 = vector.shape_cast %21 : vector<8x1x128xf32> to vector<8x128xf32>
    %cst_14 = arith.constant dense<0.000000e+00> : vector<8x128xf32>
    %23 = tpu.matmul %19, %18, %cst_14 {dimension_numbers = #tpu.dot_dimension_numbers<[1], [0], [0], [1], [0, 0, 1, 1], [], []>} : vector<8x32xf32>, vector<32x128xf32>, vector<8x128xf32> -> vector<8x128xf32>
    %24 = arith.addf %22, %23 : vector<8x128xf32>
    %25 = arith.negf %24 : vector<8x128xf32>
    %26 = math.exp %25 : vector<8x128xf32>
    %cst_15 = arith.constant 1.000000e+00 : f32
    %27 = vector.broadcast %cst_15 : f32 to vector<8x128xf32>
    %28 = arith.addf %27, %26 : vector<8x128xf32>
    %29 = arith.divf %27, %28 : vector<8x128xf32>
    %30 = vector.extract_strided_slice %29 {offsets = [0, 0], sizes = [8, 32], strides = [1, 1]} : vector<8x128xf32> to vector<8x32xf32>
    %31 = vector.extract_strided_slice %29 {offsets = [0, 32], sizes = [8, 32], strides = [1, 1]} : vector<8x128xf32> to vector<8x32xf32>
    %32 = vector.extract_strided_slice %29 {offsets = [0, 64], sizes = [8, 32], strides = [1, 1]} : vector<8x128xf32> to vector<8x32xf32>
    %33 = vector.extract_strided_slice %24 {offsets = [0, 96], sizes = [8, 32], strides = [1, 1]} : vector<8x128xf32> to vector<8x32xf32>
    %34 = math.tanh %33 : vector<8x32xf32>
    %35 = arith.mulf %31, %20 : vector<8x32xf32>
    %36 = arith.mulf %30, %34 : vector<8x32xf32>
    %37 = arith.addf %35, %36 : vector<8x32xf32>
    %38 = math.tanh %37 : vector<8x32xf32>
    %39 = arith.mulf %32, %38 : vector<8x32xf32>
    %c0_16 = arith.constant 0 : index
    %c1 = arith.constant 1 : index
    %c0_17 = arith.constant 0 : index
    %40 = vector.load %arg5[%c0_16, %c1, %c0_17] : memref<8x8x128xf32, #tpu.memory_space<vmem>>, vector<8x1x128xf32>
    %41 = vector.shape_cast %40 : vector<8x1x128xf32> to vector<8x128xf32>
    %cst_18 = arith.constant dense<0.000000e+00> : vector<8x128xf32>
    %42 = tpu.matmul %39, %18, %cst_18 {dimension_numbers = #tpu.dot_dimension_numbers<[1], [0], [0], [1], [0, 0, 1, 1], [], []>} : vector<8x32xf32>, vector<32x128xf32>, vector<8x128xf32> -> vector<8x128xf32>
    %43 = arith.addf %41, %42 : vector<8x128xf32>
    %44 = arith.negf %43 : vector<8x128xf32>
    %45 = math.exp %44 : vector<8x128xf32>
    %cst_19 = arith.constant 1.000000e+00 : f32
    %46 = vector.broadcast %cst_19 : f32 to vector<8x128xf32>
    %47 = arith.addf %46, %45 : vector<8x128xf32>
    %48 = arith.divf %46, %47 : vector<8x128xf32>
    %49 = vector.extract_strided_slice %48 {offsets = [0, 0], sizes = [8, 32], strides = [1, 1]} : vector<8x128xf32> to vector<8x32xf32>
    %50 = vector.extract_strided_slice %48 {offsets = [0, 32], sizes = [8, 32], strides = [1, 1]} : vector<8x128xf32> to vector<8x32xf32>
    %51 = vector.extract_strided_slice %48 {offsets = [0, 64], sizes = [8, 32], strides = [1, 1]} : vector<8x128xf32> to vector<8x32xf32>
    %52 = vector.extract_strided_slice %43 {offsets = [0, 96], sizes = [8, 32], strides = [1, 1]} : vector<8x128xf32> to vector<8x32xf32>
    %53 = math.tanh %52 : vector<8x32xf32>
    %54 = arith.mulf %50, %37 : vector<8x32xf32>
    %55 = arith.mulf %49, %53 : vector<8x32xf32>
    %56 = arith.addf %54, %55 : vector<8x32xf32>
    %57 = math.tanh %56 : vector<8x32xf32>
    %58 = arith.mulf %51, %57 : vector<8x32xf32>
    %c0_20 = arith.constant 0 : index
    %c2 = arith.constant 2 : index
    %c0_21 = arith.constant 0 : index
    %59 = vector.load %arg5[%c0_20, %c2, %c0_21] : memref<8x8x128xf32, #tpu.memory_space<vmem>>, vector<8x1x128xf32>
    %60 = vector.shape_cast %59 : vector<8x1x128xf32> to vector<8x128xf32>
    %cst_22 = arith.constant dense<0.000000e+00> : vector<8x128xf32>
    %61 = tpu.matmul %58, %18, %cst_22 {dimension_numbers = #tpu.dot_dimension_numbers<[1], [0], [0], [1], [0, 0, 1, 1], [], []>} : vector<8x32xf32>, vector<32x128xf32>, vector<8x128xf32> -> vector<8x128xf32>
    %62 = arith.addf %60, %61 : vector<8x128xf32>
    %63 = arith.negf %62 : vector<8x128xf32>
    %64 = math.exp %63 : vector<8x128xf32>
    %cst_23 = arith.constant 1.000000e+00 : f32
    %65 = vector.broadcast %cst_23 : f32 to vector<8x128xf32>
    %66 = arith.addf %65, %64 : vector<8x128xf32>
    %67 = arith.divf %65, %66 : vector<8x128xf32>
    %68 = vector.extract_strided_slice %67 {offsets = [0, 0], sizes = [8, 32], strides = [1, 1]} : vector<8x128xf32> to vector<8x32xf32>
    %69 = vector.extract_strided_slice %67 {offsets = [0, 32], sizes = [8, 32], strides = [1, 1]} : vector<8x128xf32> to vector<8x32xf32>
    %70 = vector.extract_strided_slice %67 {offsets = [0, 64], sizes = [8, 32], strides = [1, 1]} : vector<8x128xf32> to vector<8x32xf32>
    %71 = vector.extract_strided_slice %62 {offsets = [0, 96], sizes = [8, 32], strides = [1, 1]} : vector<8x128xf32> to vector<8x32xf32>
    %72 = math.tanh %71 : vector<8x32xf32>
    %73 = arith.mulf %69, %56 : vector<8x32xf32>
    %74 = arith.mulf %68, %72 : vector<8x32xf32>
    %75 = arith.addf %73, %74 : vector<8x32xf32>
    %76 = math.tanh %75 : vector<8x32xf32>
    %77 = arith.mulf %70, %76 : vector<8x32xf32>
    %c0_24 = arith.constant 0 : index
    %c3 = arith.constant 3 : index
    %c0_25 = arith.constant 0 : index
    %78 = vector.load %arg5[%c0_24, %c3, %c0_25] : memref<8x8x128xf32, #tpu.memory_space<vmem>>, vector<8x1x128xf32>
    %79 = vector.shape_cast %78 : vector<8x1x128xf32> to vector<8x128xf32>
    %cst_26 = arith.constant dense<0.000000e+00> : vector<8x128xf32>
    %80 = tpu.matmul %77, %18, %cst_26 {dimension_numbers = #tpu.dot_dimension_numbers<[1], [0], [0], [1], [0, 0, 1, 1], [], []>} : vector<8x32xf32>, vector<32x128xf32>, vector<8x128xf32> -> vector<8x128xf32>
    %81 = arith.addf %79, %80 : vector<8x128xf32>
    %82 = arith.negf %81 : vector<8x128xf32>
    %83 = math.exp %82 : vector<8x128xf32>
    %cst_27 = arith.constant 1.000000e+00 : f32
    %84 = vector.broadcast %cst_27 : f32 to vector<8x128xf32>
    %85 = arith.addf %84, %83 : vector<8x128xf32>
    %86 = arith.divf %84, %85 : vector<8x128xf32>
    %87 = vector.extract_strided_slice %86 {offsets = [0, 0], sizes = [8, 32], strides = [1, 1]} : vector<8x128xf32> to vector<8x32xf32>
    %88 = vector.extract_strided_slice %86 {offsets = [0, 32], sizes = [8, 32], strides = [1, 1]} : vector<8x128xf32> to vector<8x32xf32>
    %89 = vector.extract_strided_slice %86 {offsets = [0, 64], sizes = [8, 32], strides = [1, 1]} : vector<8x128xf32> to vector<8x32xf32>
    %90 = vector.extract_strided_slice %81 {offsets = [0, 96], sizes = [8, 32], strides = [1, 1]} : vector<8x128xf32> to vector<8x32xf32>
    %91 = math.tanh %90 : vector<8x32xf32>
    %92 = arith.mulf %88, %75 : vector<8x32xf32>
    %93 = arith.mulf %87, %91 : vector<8x32xf32>
    %94 = arith.addf %92, %93 : vector<8x32xf32>
    %95 = math.tanh %94 : vector<8x32xf32>
    %96 = arith.mulf %89, %95 : vector<8x32xf32>
    %c0_28 = arith.constant 0 : index
    %c4 = arith.constant 4 : index
    %c0_29 = arith.constant 0 : index
    %97 = vector.load %arg5[%c0_28, %c4, %c0_29] : memref<8x8x128xf32, #tpu.memory_space<vmem>>, vector<8x1x128xf32>
    %98 = vector.shape_cast %97 : vector<8x1x128xf32> to vector<8x128xf32>
    %cst_30 = arith.constant dense<0.000000e+00> : vector<8x128xf32>
    %99 = tpu.matmul %96, %18, %cst_30 {dimension_numbers = #tpu.dot_dimension_numbers<[1], [0], [0], [1], [0, 0, 1, 1], [], []>} : vector<8x32xf32>, vector<32x128xf32>, vector<8x128xf32> -> vector<8x128xf32>
    %100 = arith.addf %98, %99 : vector<8x128xf32>
    %101 = arith.negf %100 : vector<8x128xf32>
    %102 = math.exp %101 : vector<8x128xf32>
    %cst_31 = arith.constant 1.000000e+00 : f32
    %103 = vector.broadcast %cst_31 : f32 to vector<8x128xf32>
    %104 = arith.addf %103, %102 : vector<8x128xf32>
    %105 = arith.divf %103, %104 : vector<8x128xf32>
    %106 = vector.extract_strided_slice %105 {offsets = [0, 0], sizes = [8, 32], strides = [1, 1]} : vector<8x128xf32> to vector<8x32xf32>
    %107 = vector.extract_strided_slice %105 {offsets = [0, 32], sizes = [8, 32], strides = [1, 1]} : vector<8x128xf32> to vector<8x32xf32>
    %108 = vector.extract_strided_slice %105 {offsets = [0, 64], sizes = [8, 32], strides = [1, 1]} : vector<8x128xf32> to vector<8x32xf32>
    %109 = vector.extract_strided_slice %100 {offsets = [0, 96], sizes = [8, 32], strides = [1, 1]} : vector<8x128xf32> to vector<8x32xf32>
    %110 = math.tanh %109 : vector<8x32xf32>
    %111 = arith.mulf %107, %94 : vector<8x32xf32>
    %112 = arith.mulf %106, %110 : vector<8x32xf32>
    %113 = arith.addf %111, %112 : vector<8x32xf32>
    %114 = math.tanh %113 : vector<8x32xf32>
    %115 = arith.mulf %108, %114 : vector<8x32xf32>
    %c0_32 = arith.constant 0 : index
    %c5 = arith.constant 5 : index
    %c0_33 = arith.constant 0 : index
    %116 = vector.load %arg5[%c0_32, %c5, %c0_33] : memref<8x8x128xf32, #tpu.memory_space<vmem>>, vector<8x1x128xf32>
    %117 = vector.shape_cast %116 : vector<8x1x128xf32> to vector<8x128xf32>
    %cst_34 = arith.constant dense<0.000000e+00> : vector<8x128xf32>
    %118 = tpu.matmul %115, %18, %cst_34 {dimension_numbers = #tpu.dot_dimension_numbers<[1], [0], [0], [1], [0, 0, 1, 1], [], []>} : vector<8x32xf32>, vector<32x128xf32>, vector<8x128xf32> -> vector<8x128xf32>
    %119 = arith.addf %117, %118 : vector<8x128xf32>
    %120 = arith.negf %119 : vector<8x128xf32>
    %121 = math.exp %120 : vector<8x128xf32>
    %cst_35 = arith.constant 1.000000e+00 : f32
    %122 = vector.broadcast %cst_35 : f32 to vector<8x128xf32>
    %123 = arith.addf %122, %121 : vector<8x128xf32>
    %124 = arith.divf %122, %123 : vector<8x128xf32>
    %125 = vector.extract_strided_slice %124 {offsets = [0, 0], sizes = [8, 32], strides = [1, 1]} : vector<8x128xf32> to vector<8x32xf32>
    %126 = vector.extract_strided_slice %124 {offsets = [0, 32], sizes = [8, 32], strides = [1, 1]} : vector<8x128xf32> to vector<8x32xf32>
    %127 = vector.extract_strided_slice %124 {offsets = [0, 64], sizes = [8, 32], strides = [1, 1]} : vector<8x128xf32> to vector<8x32xf32>
    %128 = vector.extract_strided_slice %119 {offsets = [0, 96], sizes = [8, 32], strides = [1, 1]} : vector<8x128xf32> to vector<8x32xf32>
    %129 = math.tanh %128 : vector<8x32xf32>
    %130 = arith.mulf %126, %113 : vector<8x32xf32>
    %131 = arith.mulf %125, %129 : vector<8x32xf32>
    %132 = arith.addf %130, %131 : vector<8x32xf32>
    %133 = math.tanh %132 : vector<8x32xf32>
    %134 = arith.mulf %127, %133 : vector<8x32xf32>
    %c0_36 = arith.constant 0 : index
    %c6 = arith.constant 6 : index
    %c0_37 = arith.constant 0 : index
    %135 = vector.load %arg5[%c0_36, %c6, %c0_37] : memref<8x8x128xf32, #tpu.memory_space<vmem>>, vector<8x1x128xf32>
    %136 = vector.shape_cast %135 : vector<8x1x128xf32> to vector<8x128xf32>
    %cst_38 = arith.constant dense<0.000000e+00> : vector<8x128xf32>
    %137 = tpu.matmul %134, %18, %cst_38 {dimension_numbers = #tpu.dot_dimension_numbers<[1], [0], [0], [1], [0, 0, 1, 1], [], []>} : vector<8x32xf32>, vector<32x128xf32>, vector<8x128xf32> -> vector<8x128xf32>
    %138 = arith.addf %136, %137 : vector<8x128xf32>
    %139 = arith.negf %138 : vector<8x128xf32>
    %140 = math.exp %139 : vector<8x128xf32>
    %cst_39 = arith.constant 1.000000e+00 : f32
    %141 = vector.broadcast %cst_39 : f32 to vector<8x128xf32>
    %142 = arith.addf %141, %140 : vector<8x128xf32>
    %143 = arith.divf %141, %142 : vector<8x128xf32>
    %144 = vector.extract_strided_slice %143 {offsets = [0, 0], sizes = [8, 32], strides = [1, 1]} : vector<8x128xf32> to vector<8x32xf32>
    %145 = vector.extract_strided_slice %143 {offsets = [0, 32], sizes = [8, 32], strides = [1, 1]} : vector<8x128xf32> to vector<8x32xf32>
    %146 = vector.extract_strided_slice %143 {offsets = [0, 64], sizes = [8, 32], strides = [1, 1]} : vector<8x128xf32> to vector<8x32xf32>
    %147 = vector.extract_strided_slice %138 {offsets = [0, 96], sizes = [8, 32], strides = [1, 1]} : vector<8x128xf32> to vector<8x32xf32>
    %148 = math.tanh %147 : vector<8x32xf32>
    %149 = arith.mulf %145, %132 : vector<8x32xf32>
    %150 = arith.mulf %144, %148 : vector<8x32xf32>
    %151 = arith.addf %149, %150 : vector<8x32xf32>
    %152 = math.tanh %151 : vector<8x32xf32>
    %153 = arith.mulf %146, %152 : vector<8x32xf32>
    %c0_40 = arith.constant 0 : index
    %c7 = arith.constant 7 : index
    %c0_41 = arith.constant 0 : index
    %154 = vector.load %arg5[%c0_40, %c7, %c0_41] : memref<8x8x128xf32, #tpu.memory_space<vmem>>, vector<8x1x128xf32>
    %155 = vector.shape_cast %154 : vector<8x1x128xf32> to vector<8x128xf32>
    %cst_42 = arith.constant dense<0.000000e+00> : vector<8x128xf32>
    %156 = tpu.matmul %153, %18, %cst_42 {dimension_numbers = #tpu.dot_dimension_numbers<[1], [0], [0], [1], [0, 0, 1, 1], [], []>} : vector<8x32xf32>, vector<32x128xf32>, vector<8x128xf32> -> vector<8x128xf32>
    %157 = arith.addf %155, %156 : vector<8x128xf32>
    %158 = arith.negf %157 : vector<8x128xf32>
    %159 = math.exp %158 : vector<8x128xf32>
    %cst_43 = arith.constant 1.000000e+00 : f32
    %160 = vector.broadcast %cst_43 : f32 to vector<8x128xf32>
    %161 = arith.addf %160, %159 : vector<8x128xf32>
    %162 = arith.divf %160, %161 : vector<8x128xf32>
    %163 = vector.extract_strided_slice %162 {offsets = [0, 0], sizes = [8, 32], strides = [1, 1]} : vector<8x128xf32> to vector<8x32xf32>
    %164 = vector.extract_strided_slice %162 {offsets = [0, 32], sizes = [8, 32], strides = [1, 1]} : vector<8x128xf32> to vector<8x32xf32>
    %165 = vector.extract_strided_slice %162 {offsets = [0, 64], sizes = [8, 32], strides = [1, 1]} : vector<8x128xf32> to vector<8x32xf32>
    %166 = vector.extract_strided_slice %157 {offsets = [0, 96], sizes = [8, 32], strides = [1, 1]} : vector<8x128xf32> to vector<8x32xf32>
    %167 = math.tanh %166 : vector<8x32xf32>
    %168 = arith.mulf %164, %151 : vector<8x32xf32>
    %169 = arith.mulf %163, %167 : vector<8x32xf32>
    %170 = arith.addf %168, %169 : vector<8x32xf32>
    %171 = math.tanh %170 : vector<8x32xf32>
    %172 = arith.mulf %165, %171 : vector<8x32xf32>
    %c0_44 = arith.constant 0 : index
    %c0_45 = arith.constant 0 : index
    %173 = vector.load %arg4[%c0_44, %c0_45] : memref<8x32xf32, #tpu.memory_space<vmem>>, vector<8x32xf32>
    tpu.vector_store %arg4[%c0_44, %c0_45], %172 {strides = array<i32>} : memref<8x32xf32, #tpu.memory_space<vmem>>, vector<8x32xf32>,
    return
  }
}

</mosaic_0001>

<llo_original>
// kernel: ego_past_encoder.1
$region0: #{ego_past_encoder.1}
  #allocation0 [shape = 'u32[]', space=smem, size = 0x4, offset = 0x4, fixed_abs, tag = 'smem constant byte address 0x4 - core index']
  #allocation1 [shape = 'u32[144,128]{1,0:T(1,128)}', space=vmem, size = 0x12000, scoped, tag = 'internal scratch']
  #allocation2 [shape = 'f32[8,8,128]{2,1,0:T(8,128)}', space=vmem, size = 0x8000, scoped, tag = 'scratch operand']
  %s0 = inlined_call_operand.vmem [shape: f32[64,2], index: 0, kind: input, shape index: {}]
  %s1 = inlined_call_operand.vmem [shape: f32[2,128], index: 1, kind: input, shape index: {}]
  %s2 = inlined_call_operand.vmem [shape: f32[32,128], index: 2, kind: input, shape index: {}]
  %s3 = inlined_call_operand.vmem [shape: f32[1,128], index: 3, kind: input, shape index: {}]
  %s4 = inlined_call_operand.hbm [shape: f32[8,32], index: 4, kind: output, shape index: {}]
  %s5 = sld [smem:[#allocation0]]
  $region26: #{ego_past_encoder.1} parent=0
    _
  %s7 = ssub.s32 1, %s5
  %s8 = scalar_select 0, %s7, %s5
  $region1: #{ego_past_encoder.1} parent=0
    #allocation3 [shape = 'u8[4096]{0}', space=vmem, size = 0x1000, scoped, tag = 'output window, operand 0, single buffered']
    #allocation4 [shape = 's32[1]{0}', space=sflag, size = 0x4, scoped, tag = 'scoped memory for ego_past_encoder.1']
    %9 = vsyncpa [#allocation4], 0
    // Predicated region
    $region2: #{ego_past_encoder.1} parent=1 // pred_check
      _
    $region3: #{ego_past_encoder.1} parent=1 // pred_check_branch
      %11 = sbr.rel (0) target = $region5
    $region4: #{ego_past_encoder.1} parent=1 // pred_region
      _
    $region5: #{ego_past_encoder.1} parent=1 // pred_fallthru
      _
    // Predicated region
    $region6: #{ego_past_encoder.1} parent=1 // pred_check
      _
    $region7: #{ego_past_encoder.1} parent=1 // pred_check_branch
      %13 = sbr.rel (0) target = $region9
    $region8: #{ego_past_encoder.1} parent=1 // pred_region
      _
    $region9: #{ego_past_encoder.1} parent=1 // pred_fallthru
      _
    // Predicated region
    $region10: #{ego_past_encoder.1} parent=1 // pred_check
      _
    $region11: #{ego_past_encoder.1} parent=1 // pred_check_branch
      %15 = sbr.rel (0) target = $region13
    $region12: #{ego_past_encoder.1} parent=1 // pred_region
      _
    $region13: #{ego_past_encoder.1} parent=1 // pred_fallthru
      _
    // Predicated region
    $region14: #{ego_past_encoder.1} parent=1 // pred_check
      _
    $region15: #{ego_past_encoder.1} parent=1 // pred_check_branch
      %17 = sbr.rel (0) target = $region17
    $region16: #{ego_past_encoder.1} parent=1 // pred_region
      _
    $region17: #{ego_past_encoder.1} parent=1 // pred_fallthru
      _
    %v18 = vld [vmem:[%s0] sm:$0xff]
    %v19 = vld [vmem:[%s0 + $0x8] sm:$0xff]
    %v20 = vld [vmem:[%s0 + $0x10] sm:$0xff]
    %v21 = vld [vmem:[%s0 + $0x18] sm:$0xff]
    %v22 = vld [vmem:[%s0 + $0x20] sm:$0xff]
    %v23 = vld [vmem:[%s0 + $0x28] sm:$0xff]
    %v24 = vld [vmem:[%s0 + $0x30] sm:$0xff]
    %v25 = vld [vmem:[%s0 + $0x38] sm:$0xff]
    %v26 = vld [vmem:[%s1] sm:$0x3]
    %28 = vset.pattern.permute.xlu0 0
    %29 = vperm.xlu0 %28, %v18
    %v30 = vpop.permute.xlu0 %29
    %33 = vset.pattern.permute.xlu0 0
    %34 = vperm.xlu0 %33, %v19
    %v35 = vpop.permute.xlu0 %34
    %38 = vset.pattern.permute.xlu0 0
    %39 = vperm.xlu0 %38, %v20
    %v40 = vpop.permute.xlu0 %39
    %43 = vset.pattern.permute.xlu0 0
    %44 = vperm.xlu0 %43, %v21
    %v45 = vpop.permute.xlu0 %44
    %48 = vset.pattern.permute.xlu0 0
    %49 = vperm.xlu0 %48, %v22
    %v50 = vpop.permute.xlu0 %49
    %53 = vset.pattern.permute.xlu0 0
    %54 = vperm.xlu0 %53, %v23
    %v55 = vpop.permute.xlu0 %54
    %58 = vset.pattern.permute.xlu0 0
    %59 = vperm.xlu0 %58, %v24
    %v60 = vpop.permute.xlu0 %59
    %63 = vset.pattern.permute.xlu0 0
    %64 = vperm.xlu0 %63, %v25
    %v65 = vpop.permute.xlu0 %64
    %v67 = vlaneseq
    %v68 = vshrl.u32 %v67, 7
    %v69 = vsub.s32 0, %v68
    %v70 = vrot.slane %v26, %v69
    %v71 = vmul.f32 %v30, %v70
    %v72 = vmul.f32 %v35, %v70
    %v73 = vmul.f32 %v40, %v70
    %v74 = vmul.f32 %v45, %v70
    %v75 = vmul.f32 %v50, %v70
    %v76 = vmul.f32 %v55, %v70
    %v77 = vmul.f32 %v60, %v70
    %v78 = vmul.f32 %v65, %v70
    %79 = vset.pattern.permute.xlu0 1
    %80 = vperm.xlu0 %79, %v18
    %v81 = vpop.permute.xlu0 %80
    %83 = vset.pattern.permute.xlu0 1
    %84 = vperm.xlu0 %83, %v19
    %v85 = vpop.permute.xlu0 %84
    %87 = vset.pattern.permute.xlu0 1
    %88 = vperm.xlu0 %87, %v20
    %v89 = vpop.permute.xlu0 %88
    %91 = vset.pattern.permute.xlu0 1
    %92 = vperm.xlu0 %91, %v21
    %v93 = vpop.permute.xlu0 %92
    %95 = vset.pattern.permute.xlu0 1
    %96 = vperm.xlu0 %95, %v22
    %v97 = vpop.permute.xlu0 %96
    %99 = vset.pattern.permute.xlu0 1
    %100 = vperm.xlu0 %99, %v23
    %v101 = vpop.permute.xlu0 %100
    %103 = vset.pattern.permute.xlu0 1
    %104 = vperm.xlu0 %103, %v24
    %v105 = vpop.permute.xlu0 %104
    %107 = vset.pattern.permute.xlu0 1
    %108 = vperm.xlu0 %107, %v25
    %v109 = vpop.permute.xlu0 %108
    %v111 = vlaneseq
    %v112 = vshrl.u32 %v111, 7
    %v113 = vsub.s32 1, %v112
    %v114 = vrot.slane %v26, %v113
    %v115 = vmul.f32 %v81, %v114
    %v116 = vmul.f32 %v85, %v114
    %v117 = vmul.f32 %v89, %v114
    %v118 = vmul.f32 %v93, %v114
    %v119 = vmul.f32 %v97, %v114
    %v120 = vmul.f32 %v101, %v114
    %v121 = vmul.f32 %v105, %v114
    %v122 = vmul.f32 %v109, %v114
    %v123 = vadd.f32 %v71, %v115
    %v124 = vadd.f32 %v72, %v116
    %v125 = vadd.f32 %v73, %v117
    %v126 = vadd.f32 %v74, %v118
    %v127 = vadd.f32 %v75, %v119
    %v128 = vadd.f32 %v76, %v120
    %v129 = vadd.f32 %v77, %v121
    %v130 = vadd.f32 %v78, %v122
    %v131 = vld [vmem:[%s3] sm:$0x1]
    %v133 = vlaneseq
    %v134 = vshrl.u32 %v133, 7
    %v135 = vsub.s32 0, %v134
    %v136 = vrot.slane %v131, %v135
    %v138 = vadd.f32 %v123, %v136
    %v139 = vadd.f32 %v124, %v136
    %v140 = vadd.f32 %v125, %v136
    %v141 = vadd.f32 %v126, %v136
    %v142 = vadd.f32 %v127, %v136
    %v143 = vadd.f32 %v128, %v136
    %v144 = vadd.f32 %v129, %v136
    %v145 = vadd.f32 %v130, %v136
    %146 = vst [vmem:[#allocation2] sm:$0xff] %v138
    %147 = vst [vmem:[#allocation2 + $0x8] sm:$0xff] %v139
    %148 = vst [vmem:[#allocation2 + $0x10] sm:$0xff] %v140
    %149 = vst [vmem:[#allocation2 + $0x18] sm:$0xff] %v141
    %150 = vst [vmem:[#allocation2 + $0x20] sm:$0xff] %v142
    %151 = vst [vmem:[#allocation2 + $0x28] sm:$0xff] %v143
    %152 = vst [vmem:[#allocation2 + $0x30] sm:$0xff] %v144
    %153 = vst [vmem:[#allocation2 + $0x38] sm:$0xff] %v145
    %v154 = vld [vmem:[%s2] sm:$0xff]
    %v155 = vld [vmem:[%s2 + $0x8] sm:$0xff]
    %v156 = vld [vmem:[%s2 + $0x10] sm:$0xff]
    %v157 = vld [vmem:[%s2 + $0x18] sm:$0xff]
    %v158 = vld [vmem:[#allocation2] sm:$0x1]
    %v159 = vld [vmem:[#allocation2 + $0x8] sm:$0x1]
    %v160 = vld [vmem:[#allocation2 + $0x10] sm:$0x1]
    %v161 = vld [vmem:[#allocation2 + $0x18] sm:$0x1]
    %v162 = vld [vmem:[#allocation2 + $0x20] sm:$0x1]
    %v163 = vld [vmem:[#allocation2 + $0x28] sm:$0x1]
    %v164 = vld [vmem:[#allocation2 + $0x30] sm:$0x1]
    %v165 = vld [vmem:[#allocation2 + $0x38] sm:$0x1]
    %vm166 = vcmask 261120
    %v168 = vsel %vm166, 0.0, 0
    %170 = vmatprep.subr.mxu0 0.0
    %171 = vmatpush1.msra.mxu0 %v154
    %172 = vmatprep.subr.mxu0 0.0
    %173 = vmatpush1.msra.mxu0 %v155
    %174 = vmatprep.subr.mxu0 0.0
    %175 = vmatpush1.msra.mxu0 %v156
    %176 = vmatprep.subr.mxu0 0.0
    %177 = vmatpush1.msra.mxu0 %v157
    %178 = vmatprep.subr.mxu0 0.0
    %179 = vmatpush1.msra.mxu0 0.0
    %180 = vmatprep.subr.mxu0 0.0
    %181 = vmatpush1.msra.mxu0 0.0
    %182 = vmatprep.subr.mxu0 0.0
    %183 = vmatpush1.msra.mxu0 0.0
    %184 = vmatprep.subr.mxu0 0.0
    %185 = vmatpush1.msra.mxu0 0.0
    %186 = vmatprep.subr.mxu0 0.0
    %187 = vmatpush1.msra.mxu0 0.0
    %188 = vmatprep.subr.mxu0 0.0
    %189 = vmatpush1.msra.mxu0 0.0
    %190 = vmatprep.subr.mxu0 0.0
    %191 = vmatpush1.msra.mxu0 0.0
    %192 = vmatprep.subr.mxu0 0.0
    %193 = vmatpush1.msra.mxu0 0.0
    %194 = vmatprep.subr.mxu0 0.0
    %195 = vmatpush1.msra.mxu0 0.0
    %196 = vmatprep.subr.mxu0 0.0
    %197 = vmatpush1.msra.mxu0 0.0
    %198 = vmatprep.subr.mxu0 0.0
    %199 = vmatpush1.msra.mxu0 0.0
    %200 = vmatprep.subr.mxu0 0.0
    %201 = vmatpush1.msra.mxu0 0.0
    %202 = vmatprep.subr.mxu0 0.0
    %203 = vmatpush1.msra.mxu0 0.0
    %204 = vmatprep.subr.mxu0 0.0
    %205 = vmatpush1.msra.mxu0 0.0
    %206 = vmatprep.subr.mxu0 0.0
    %207 = vmatpush1.msra.mxu0 0.0
    %208 = vmatprep.subr.mxu0 0.0
    %209 = vmatpush1.msra.mxu0 0.0
    %210 = vmatprep.subr.mxu0 0.0
    %211 = vmatpush1.msra.mxu0 0.0
    %212 = vmatprep.subr.mxu0 0.0
    %213 = vmatpush1.msra.mxu0 0.0
    %214 = vmatprep.subr.mxu0 0.0
    %215 = vmatpush1.msra.mxu0 0.0
    %216 = vmatprep.subr.mxu0 0.0
    %217 = vmatpush1.msra.mxu0 0.0
    %218 = vmatprep.subr.mxu0 0.0
    %219 = vmatpush1.msra.mxu0 0.0
    %220 = vmatprep.subr.mxu0 0.0
    %221 = vmatpush1.msra.mxu0 0.0
    %222 = vmatprep.subr.mxu0 0.0
    %223 = vmatpush1.msra.mxu0 0.0
    %224 = vmatprep.subr.mxu0 0.0
    %225 = vmatpush1.msra.mxu0 0.0
    %226 = vmatprep.subr.mxu0 0.0
    %227 = vmatpush1.msra.mxu0 0.0
    %228 = vmatprep.subr.mxu0 0.0
    %229 = vmatpush1.msra.mxu0 0.0
    %230 = vmatprep.subr.mxu0 0.0
    %231 = vmatpush1.msra.mxu0 0.0
    %232 = vmatprep.subr.mxu0 0.0
    %233 = vmatpush1.msra.mxu0 0.0
    %234 = vmatprep.mubr.f32.mxu0 0.0
    %235 = vmatmul.mubr.f32.gmra.mrb[0].mxu0 %v168
    %v236 = vpop.f32.mrb[0].mxu0
    %v237 = vadd.f32 0.0, %v236
    %v238 = vpop.f32.mrb[0].mxu0
    %239 = vdwg.mxu0
    %v241 = vrot.slane %v237, 1
    %v242 = vrot.slane %v237, 2
    %v243 = vrot.slane %v237, 3
    %v244 = vrot.slane %v237, 4
    %v245 = vrot.slane %v237, 5
    %v246 = vrot.slane %v237, 6
    %v247 = vrot.slane %v237, 7
    %v256 = vadd.f32 %v158, %v237
    %v257 = vadd.f32 %v159, %v241
    %v258 = vadd.f32 %v160, %v242
    %v259 = vadd.f32 %v161, %v243
    %v260 = vadd.f32 %v162, %v244
    %v261 = vadd.f32 %v163, %v245
    %v262 = vadd.f32 %v164, %v246
    %v263 = vadd.f32 %v165, %v247
    %v264 = vxor.u32 %v256, 2147483648
    %v265 = vxor.u32 %v257, 2147483648
    %v266 = vxor.u32 %v258, 2147483648
    %v267 = vxor.u32 %v259, 2147483648
    %v268 = vxor.u32 %v260, 2147483648
    %v269 = vxor.u32 %v261, 2147483648
    %v270 = vxor.u32 %v262, 2147483648
    %v271 = vxor.u32 %v263, 2147483648
    %v272 = vmul.f32 %v264, 1.442695
    %v273 = vpow.pop %v272
    %v274 = vmul.f32 %v265, 1.442695
    %v275 = vpow.pop %v274
    %v276 = vmul.f32 %v266, 1.442695
    %v277 = vpow.pop %v276
    %v278 = vmul.f32 %v267, 1.442695
    %v279 = vpow.pop %v278
    %v280 = vmul.f32 %v268, 1.442695
    %v281 = vpow.pop %v280
    %v282 = vmul.f32 %v269, 1.442695
    %v283 = vpow.pop %v282
    %v284 = vmul.f32 %v270, 1.442695
    %v285 = vpow.pop %v284
    %v286 = vmul.f32 %v271, 1.442695
    %v287 = vpow.pop %v286
    %v288 = vadd.f32 %v273, 1.0
    %v289 = vadd.f32 %v275, 1.0
    %v290 = vadd.f32 %v277, 1.0
    %v291 = vadd.f32 %v279, 1.0
    %v292 = vadd.f32 %v281, 1.0
    %v293 = vadd.f32 %v283, 1.0
    %v294 = vadd.f32 %v285, 1.0
    %v295 = vadd.f32 %v287, 1.0
    %v296 = vrcp.pop %v288
    %v297 = vmul.f32 1.0, %v296
    %v298 = vrcp.pop %v289
    %v299 = vmul.f32 1.0, %v298
    %v300 = vrcp.pop %v290
    %v301 = vmul.f32 1.0, %v300
    %v302 = vrcp.pop %v291
    %v303 = vmul.f32 1.0, %v302
    %v304 = vrcp.pop %v292
    %v305 = vmul.f32 1.0, %v304
    %v306 = vrcp.pop %v293
    %v307 = vmul.f32 1.0, %v306
    %v308 = vrcp.pop %v294
    %v309 = vmul.f32 1.0, %v308
    %v310 = vrcp.pop %v295
    %v311 = vmul.f32 1.0, %v310
    %v312 = vtanh.pop %v256
    %v313 = vtanh.pop %v257
    %v314 = vtanh.pop %v258
    %v315 = vtanh.pop %v259
    %v316 = vtanh.pop %v260
    %v317 = vtanh.pop %v261
    %v318 = vtanh.pop %v262
    %v319 = vtanh.pop %v263
    %v320 = vmul.f32 %v297, 0.0
    %v321 = vmul.f32 %v299, 0.0
    %v322 = vmul.f32 %v301, 0.0
    %v323 = vmul.f32 %v303, 0.0
    %v324 = vmul.f32 %v305, 0.0
    %v325 = vmul.f32 %v307, 0.0
    %v326 = vmul.f32 %v309, 0.0
    %v327 = vmul.f32 %v311, 0.0
    %336 = vrot.lane.b32.xlu0 %v312, 32
    %v337 = vpop.permute.xlu0 %336
    %338 = vrot.lane.b32.xlu0 %v313, 32
    %v339 = vpop.permute.xlu0 %338
    %340 = vrot.lane.b32.xlu0 %v314, 32
    %v341 = vpop.permute.xlu0 %340
    %342 = vrot.lane.b32.xlu0 %v315, 32
    %v343 = vpop.permute.xlu0 %342
    %344 = vrot.lane.b32.xlu0 %v316, 32
    %v345 = vpop.permute.xlu0 %344
    %346 = vrot.lane.b32.xlu0 %v317, 32
    %v347 = vpop.permute.xlu0 %346
    %348 = vrot.lane.b32.xlu0 %v318, 32
    %v349 = vpop.permute.xlu0 %348
    %350 = vrot.lane.b32.xlu0 %v319, 32
    %v351 = vpop.permute.xlu0 %350
    %v360 = vmul.f32 %v297, %v337
    %v361 = vmul.f32 %v299, %v339
    %v362 = vmul.f32 %v301, %v341
    %v363 = vmul.f32 %v303, %v343
    %v364 = vmul.f32 %v305, %v345
    %v365 = vmul.f32 %v307, %v347
    %v366 = vmul.f32 %v309, %v349
    %v367 = vmul.f32 %v311, %v351
    %376 = vrot.lane.b32.xlu0 %v360, 32
    %v377 = vpop.permute.xlu0 %376
    %378 = vrot.lane.b32.xlu0 %v361, 32
    %v379 = vpop.permute.xlu0 %378
    %380 = vrot.lane.b32.xlu0 %v362, 32
    %v381 = vpop.permute.xlu0 %380
    %382 = vrot.lane.b32.xlu0 %v363, 32
    %v383 = vpop.permute.xlu0 %382
    %384 = vrot.lane.b32.xlu0 %v364, 32
    %v385 = vpop.permute.xlu0 %384
    %386 = vrot.lane.b32.xlu0 %v365, 32
    %v387 = vpop.permute.xlu0 %386
    %388 = vrot.lane.b32.xlu0 %v366, 32
    %v389 = vpop.permute.xlu0 %388
    %390 = vrot.lane.b32.xlu0 %v367, 32
    %v391 = vpop.permute.xlu0 %390
    %v400 = vadd.f32 %v320, %v377
    %v401 = vadd.f32 %v321, %v379
    %v402 = vadd.f32 %v322, %v381
    %v403 = vadd.f32 %v323, %v383
    %v404 = vadd.f32 %v324, %v385
    %v405 = vadd.f32 %v325, %v387
    %v406 = vadd.f32 %v326, %v389
    %v407 = vadd.f32 %v327, %v391
    %v408 = vtanh.pop %v400
    %v409 = vtanh.pop %v401
    %v410 = vtanh.pop %v402
    %v411 = vtanh.pop %v403
    %v412 = vtanh.pop %v404
    %v413 = vtanh.pop %v405
    %v414 = vtanh.pop %v406
    %v415 = vtanh.pop %v407
    %424 = vrot.lane.b32.xlu0 %v408, 32
    %v425 = vpop.permute.xlu0 %424
    %426 = vrot.lane.b32.xlu0 %v409, 32
    %v427 = vpop.permute.xlu0 %426
    %428 = vrot.lane.b32.xlu0 %v410, 32
    %v429 = vpop.permute.xlu0 %428
    %430 = vrot.lane.b32.xlu0 %v411, 32
    %v431 = vpop.permute.xlu0 %430
    %432 = vrot.lane.b32.xlu0 %v412, 32
    %v433 = vpop.permute.xlu0 %432
    %434 = vrot.lane.b32.xlu0 %v413, 32
    %v435 = vpop.permute.xlu0 %434
    %436 = vrot.lane.b32.xlu0 %v414, 32
    %v437 = vpop.permute.xlu0 %436
    %438 = vrot.lane.b32.xlu0 %v415, 32
    %v439 = vpop.permute.xlu0 %438
    %v448 = vmul.f32 %v297, %v425
    %v449 = vmul.f32 %v299, %v427
    %v450 = vmul.f32 %v301, %v429
    %v451 = vmul.f32 %v303, %v431
    %v452 = vmul.f32 %v305, %v433
    %v453 = vmul.f32 %v307, %v435
    %v454 = vmul.f32 %v309, %v437
    %v455 = vmul.f32 %v311, %v439
    %v456 = vld [vmem:[#allocation2 + $0x1] sm:$0x1]
    %v457 = vld [vmem:[#allocation2 + $0x9] sm:$0x1]
    %v458 = vld [vmem:[#allocation2 + $0x11] sm:$0x1]
    %v459 = vld [vmem:[#allocation2 + $0x19] sm:$0x1]
    %v460 = vld [vmem:[#allocation2 + $0x21] sm:$0x1]
    %v461 = vld [vmem:[#allocation2 + $0x29] sm:$0x1]
    %v462 = vld [vmem:[#allocation2 + $0x31] sm:$0x1]
    %v463 = vld [vmem:[#allocation2 + $0x39] sm:$0x1]
    %v472 = vrot.slane %v449, 7
    %vm473 = vcmask 1041409
    %v474 = vsel %vm473, %v472, %v448
    %v475 = vrot.slane %v450, 6
    %vm476 = vcmask 1042434
    %v477 = vsel %vm476, %v475, %v474
    %v478 = vrot.slane %v451, 5
    %vm479 = vcmask 1043459
    %v480 = vsel %vm479, %v478, %v477
    %v481 = vrot.slane %v452, 4
    %vm482 = vcmask 1044484
    %v483 = vsel %vm482, %v481, %v480
    %v484 = vrot.slane %v453, 3
    %vm485 = vcmask 1045509
    %v486 = vsel %vm485, %v484, %v483
    %v487 = vrot.slane %v454, 2
    %vm488 = vcmask 1046534
    %v489 = vsel %vm488, %v487, %v486
    %v490 = vrot.slane %v455, 1
    %vm491 = vcmask 1047559
    %v492 = vsel %vm491, %v490, %v489
    %493 = vrot.lane.b32.xlu0 %v492, 64
    %v494 = vpop.permute.xlu0 %493
    %v495 = vsel %vm166, %v494, 0
    %497 = vmatprep.subr.mxu0 0.0
    %498 = vmatpush1.msra.mxu0 %v154
    %499 = vmatprep.subr.mxu0 0.0
    %500 = vmatpush1.msra.mxu0 %v155
    %501 = vmatprep.subr.mxu0 0.0
    %502 = vmatpush1.msra.mxu0 %v156
    %503 = vmatprep.subr.mxu0 0.0
    %504 = vmatpush1.msra.mxu0 %v157
    %505 = vmatprep.subr.mxu0 0.0
    %506 = vmatpush1.msra.mxu0 0.0
    %507 = vmatprep.subr.mxu0 0.0
    %508 = vmatpush1.msra.mxu0 0.0
    %509 = vmatprep.subr.mxu0 0.0
    %510 = vmatpush1.msra.mxu0 0.0
    %511 = vmatprep.subr.mxu0 0.0
    %512 = vmatpush1.msra.mxu0 0.0
    %513 = vmatprep.subr.mxu0 0.0
    %514 = vmatpush1.msra.mxu0 0.0
    %515 = vmatprep.subr.mxu0 0.0
    %516 = vmatpush1.msra.mxu0 0.0
    %517 = vmatprep.subr.mxu0 0.0
    %518 = vmatpush1.msra.mxu0 0.0
    %519 = vmatprep.subr.mxu0 0.0
    %520 = vmatpush1.msra.mxu0 0.0
    %521 = vmatprep.subr.mxu0 0.0
    %522 = vmatpush1.msra.mxu0 0.0
    %523 = vmatprep.subr.mxu0 0.0
    %524 = vmatpush1.msra.mxu0 0.0
    %525 = vmatprep.subr.mxu0 0.0
    %526 = vmatpush1.msra.mxu0 0.0
    %527 = vmatprep.subr.mxu0 0.0
    %528 = vmatpush1.msra.mxu0 0.0
    %529 = vmatprep.subr.mxu0 0.0
    %530 = vmatpush1.msra.mxu0 0.0
    %531 = vmatprep.subr.mxu0 0.0
    %532 = vmatpush1.msra.mxu0 0.0
    %533 = vmatprep.subr.mxu0 0.0
    %534 = vmatpush1.msra.mxu0 0.0
    %535 = vmatprep.subr.mxu0 0.0
    %536 = vmatpush1.msra.mxu0 0.0
    %537 = vmatprep.subr.mxu0 0.0
    %538 = vmatpush1.msra.mxu0 0.0
    %539 = vmatprep.subr.mxu0 0.0
    %540 = vmatpush1.msra.mxu0 0.0
    %541 = vmatprep.subr.mxu0 0.0
    %542 = vmatpush1.msra.mxu0 0.0
    %543 = vmatprep.subr.mxu0 0.0
    %544 = vmatpush1.msra.mxu0 0.0
    %545 = vmatprep.subr.mxu0 0.0
    %546 = vmatpush1.msra.mxu0 0.0
    %547 = vmatprep.subr.mxu0 0.0
    %548 = vmatpush1.msra.mxu0 0.0
    %549 = vmatprep.subr.mxu0 0.0
    %550 = vmatpush1.msra.mxu0 0.0
    %551 = vmatprep.subr.mxu0 0.0
    %552 = vmatpush1.msra.mxu0 0.0
    %553 = vmatprep.subr.mxu0 0.0
    %554 = vmatpush1.msra.mxu0 0.0
    %555 = vmatprep.subr.mxu0 0.0
    %556 = vmatpush1.msra.mxu0 0.0
    %557 = vmatprep.subr.mxu0 0.0
    %558 = vmatpush1.msra.mxu0 0.0
    %559 = vmatprep.subr.mxu0 0.0
    %560 = vmatpush1.msra.mxu0 0.0
    %561 = vmatprep.mubr.f32.mxu0 0.0
    %562 = vmatmul.mubr.f32.gmra.mrb[0].mxu0 %v495
    %v563 = vpop.f32.mrb[0].mxu0
    %v564 = vadd.f32 0.0, %v563
    %v565 = vpop.f32.mrb[0].mxu0
    %566 = vdwg.mxu0
    %v568 = vrot.slane %v564, 1
    %v569 = vrot.slane %v564, 2
    %v570 = vrot.slane %v564, 3
    %v571 = vrot.slane %v564, 4
    %v572 = vrot.slane %v564, 5
    %v573 = vrot.slane %v564, 6
    %v574 = vrot.slane %v564, 7
    %v583 = vadd.f32 %v456, %v564
    %v584 = vadd.f32 %v457, %v568
    %v585 = vadd.f32 %v458, %v569
    %v586 = vadd.f32 %v459, %v570
    %v587 = vadd.f32 %v460, %v571
    %v588 = vadd.f32 %v461, %v572
    %v589 = vadd.f32 %v462, %v573
    %v590 = vadd.f32 %v463, %v574
    %v591 = vxor.u32 %v583, 2147483648
    %v592 = vxor.u32 %v584, 2147483648
    %v593 = vxor.u32 %v585, 2147483648
    %v594 = vxor.u32 %v586, 2147483648
    %v595 = vxor.u32 %v587, 2147483648
    %v596 = vxor.u32 %v588, 2147483648
    %v597 = vxor.u32 %v589, 2147483648
    %v598 = vxor.u32 %v590, 2147483648
    %v599 = vmul.f32 %v591, 1.442695
    %v600 = vpow.pop %v599
    %v601 = vmul.f32 %v592, 1.442695
    %v602 = vpow.pop %v601
    %v603 = vmul.f32 %v593, 1.442695
    %v604 = vpow.pop %v603
    %v605 = vmul.f32 %v594, 1.442695
    %v606 = vpow.pop %v605
    %v607 = vmul.f32 %v595, 1.442695
    %v608 = vpow.pop %v607
    %v609 = vmul.f32 %v596, 1.442695
    %v610 = vpow.pop %v609
    %v611 = vmul.f32 %v597, 1.442695
    %v612 = vpow.pop %v611
    %v613 = vmul.f32 %v598, 1.442695
    %v614 = vpow.pop %v613
    %v615 = vadd.f32 %v600, 1.0
    %v616 = vadd.f32 %v602, 1.0
    %v617 = vadd.f32 %v604, 1.0
    %v618 = vadd.f32 %v606, 1.0
    %v619 = vadd.f32 %v608, 1.0
    %v620 = vadd.f32 %v610, 1.0
    %v621 = vadd.f32 %v612, 1.0
    %v622 = vadd.f32 %v614, 1.0
    %v623 = vrcp.pop %v615
    %v624 = vmul.f32 1.0, %v623
    %v625 = vrcp.pop %v616
    %v626 = vmul.f32 1.0, %v625
    %v627 = vrcp.pop %v617
    %v628 = vmul.f32 1.0, %v627
    %v629 = vrcp.pop %v618
    %v630 = vmul.f32 1.0, %v629
    %v631 = vrcp.pop %v619
    %v632 = vmul.f32 1.0, %v631
    %v633 = vrcp.pop %v620
    %v634 = vmul.f32 1.0, %v633
    %v635 = vrcp.pop %v621
    %v636 = vmul.f32 1.0, %v635
    %v637 = vrcp.pop %v622
    %v638 = vmul.f32 1.0, %v637
    %v639 = vtanh.pop %v583
    %v640 = vtanh.pop %v584
    %v641 = vtanh.pop %v585
    %v642 = vtanh.pop %v586
    %v643 = vtanh.pop %v587
    %v644 = vtanh.pop %v588
    %v645 = vtanh.pop %v589
    %v646 = vtanh.pop %v590
    %v647 = vmul.f32 %v624, %v400
    %v648 = vmul.f32 %v626, %v401
    %v649 = vmul.f32 %v628, %v402
    %v650 = vmul.f32 %v630, %v403
    %v651 = vmul.f32 %v632, %v404
    %v652 = vmul.f32 %v634, %v405
    %v653 = vmul.f32 %v636, %v406
    %v654 = vmul.f32 %v638, %v407
    %663 = vrot.lane.b32.xlu0 %v639, 32
    %v664 = vpop.permute.xlu0 %663
    %665 = vrot.lane.b32.xlu0 %v640, 32
    %v666 = vpop.permute.xlu0 %665
    %667 = vrot.lane.b32.xlu0 %v641, 32
    %v668 = vpop.permute.xlu0 %667
    %669 = vrot.lane.b32.xlu0 %v642, 32
    %v670 = vpop.permute.xlu0 %669
    %671 = vrot.lane.b32.xlu0 %v643, 32
    %v672 = vpop.permute.xlu0 %671
    %673 = vrot.lane.b32.xlu0 %v644, 32
    %v674 = vpop.permute.xlu0 %673
    %675 = vrot.lane.b32.xlu0 %v645, 32
    %v676 = vpop.permute.xlu0 %675
    %677 = vrot.lane.b32.xlu0 %v646, 32
    %v678 = vpop.permute.xlu0 %677
    %v687 = vmul.f32 %v624, %v664
    %v688 = vmul.f32 %v626, %v666
    %v689 = vmul.f32 %v628, %v668
    %v690 = vmul.f32 %v630, %v670
    %v691 = vmul.f32 %v632, %v672
    %v692 = vmul.f32 %v634, %v674
    %v693 = vmul.f32 %v636, %v676
    %v694 = vmul.f32 %v638, %v678
    %703 = vrot.lane.b32.xlu0 %v687, 32
    %v704 = vpop.permute.xlu0 %703
    %705 = vrot.lane.b32.xlu0 %v688, 32
    %v706 = vpop.permute.xlu0 %705
    %707 = vrot.lane.b32.xlu0 %v689, 32
    %v708 = vpop.permute.xlu0 %707
    %709 = vrot.lane.b32.xlu0 %v690, 32
    %v710 = vpop.permute.xlu0 %709
    %711 = vrot.lane.b32.xlu0 %v691, 32
    %v712 = vpop.permute.xlu0 %711
    %713 = vrot.lane.b32.xlu0 %v692, 32
    %v714 = vpop.permute.xlu0 %713
    %715 = vrot.lane.b32.xlu0 %v693, 32
    %v716 = vpop.permute.xlu0 %715
    %717 = vrot.lane.b32.xlu0 %v694, 32
    %v718 = vpop.permute.xlu0 %717
    %v727 = vadd.f32 %v647, %v704
    %v728 = vadd.f32 %v648, %v706
    %v729 = vadd.f32 %v649, %v708
    %v730 = vadd.f32 %v650, %v710
    %v731 = vadd.f32 %v651, %v712
    %v732 = vadd.f32 %v652, %v714
    %v733 = vadd.f32 %v653, %v716
    %v734 = vadd.f32 %v654, %v718
    %v735 = vtanh.pop %v727
    %v736 = vtanh.pop %v728
    %v737 = vtanh.pop %v729
    %v738 = vtanh.pop %v730
    %v739 = vtanh.pop %v731
    %v740 = vtanh.pop %v732
    %v741 = vtanh.pop %v733
    %v742 = vtanh.pop %v734
    %751 = vrot.lane.b32.xlu0 %v735, 32
    %v752 = vpop.permute.xlu0 %751
    %753 = vrot.lane.b32.xlu0 %v736, 32
    %v754 = vpop.permute.xlu0 %753
    %755 = vrot.lane.b32.xlu0 %v737, 32
    %v756 = vpop.permute.xlu0 %755
    %757 = vrot.lane.b32.xlu0 %v738, 32
    %v758 = vpop.permute.xlu0 %757
    %759 = vrot.lane.b32.xlu0 %v739, 32
    %v760 = vpop.permute.xlu0 %759
    %761 = vrot.lane.b32.xlu0 %v740, 32
    %v762 = vpop.permute.xlu0 %761
    %763 = vrot.lane.b32.xlu0 %v741, 32
    %v764 = vpop.permute.xlu0 %763
    %765 = vrot.lane.b32.xlu0 %v742, 32
    %v766 = vpop.permute.xlu0 %765
    %v775 = vmul.f32 %v624, %v752
    %v776 = vmul.f32 %v626, %v754
    %v777 = vmul.f32 %v628, %v756
    %v778 = vmul.f32 %v630, %v758
    %v779 = vmul.f32 %v632, %v760
    %v780 = vmul.f32 %v634, %v762
    %v781 = vmul.f32 %v636, %v764
    %v782 = vmul.f32 %v638, %v766
    %v783 = vld [vmem:[#allocation2 + $0x2] sm:$0x1]
    %v784 = vld [vmem:[#allocation2 + $0xa] sm:$0x1]
    %v785 = vld [vmem:[#allocation2 + $0x12] sm:$0x1]
    %v786 = vld [vmem:[#allocation2 + $0x1a] sm:$0x1]
    %v787 = vld [vmem:[#allocation2 + $0x22] sm:$0x1]
    %v788 = vld [vmem:[#allocation2 + $0x2a] sm:$0x1]
    %v789 = vld [vmem:[#allocation2 + $0x32] sm:$0x1]
    %v790 = vld [vmem:[#allocation2 + $0x3a] sm:$0x1]
    %v799 = vrot.slane %v776, 7
    %v800 = vsel %vm473, %v799, %v775
    %v801 = vrot.slane %v777, 6
    %v802 = vsel %vm476, %v801, %v800
    %v803 = vrot.slane %v778, 5
    %v804 = vsel %vm479, %v803, %v802
    %v805 = vrot.slane %v779, 4
    %v806 = vsel %vm482, %v805, %v804
    %v807 = vrot.slane %v780, 3
    %v808 = vsel %vm485, %v807, %v806
    %v809 = vrot.slane %v781, 2
    %v810 = vsel %vm488, %v809, %v808
    %v811 = vrot.slane %v782, 1
    %v812 = vsel %vm491, %v811, %v810
    %813 = vrot.lane.b32.xlu0 %v812, 64
    %v814 = vpop.permute.xlu0 %813
    %v815 = vsel %vm166, %v814, 0
    %817 = vmatprep.subr.mxu0 0.0
    %818 = vmatpush1.msra.mxu0 %v154
    %819 = vmatprep.subr.mxu0 0.0
    %820 = vmatpush1.msra.mxu0 %v155
    %821 = vmatprep.subr.mxu0 0.0
    %822 = vmatpush1.msra.mxu0 %v156
    %823 = vmatprep.subr.mxu0 0.0
    %824 = vmatpush1.msra.mxu0 %v157
    %825 = vmatprep.subr.mxu0 0.0
    %826 = vmatpush1.msra.mxu0 0.0
    %827 = vmatprep.subr.mxu0 0.0
    %828 = vmatpush1.msra.mxu0 0.0
    %829 = vmatprep.subr.mxu0 0.0
    %830 = vmatpush1.msra.mxu0 0.0
    %831 = vmatprep.subr.mxu0 0.0
    %832 = vmatpush1.msra.mxu0 0.0
    %833 = vmatprep.subr.mxu0 0.0
    %834 = vmatpush1.msra.mxu0 0.0
    %835 = vmatprep.subr.mxu0 0.0
    %836 = vmatpush1.msra.mxu0 0.0
    %837 = vmatprep.subr.mxu0 0.0
    %838 = vmatpush1.msra.mxu0 0.0
    %839 = vmatprep.subr.mxu0 0.0
    %840 = vmatpush1.msra.mxu0 0.0
    %841 = vmatprep.subr.mxu0 0.0
    %842 = vmatpush1.msra.mxu0 0.0
    %843 = vmatprep.subr.mxu0 0.0
    %844 = vmatpush1.msra.mxu0 0.0
    %845 = vmatprep.subr.mxu0 0.0
    %846 = vmatpush1.msra.mxu0 0.0
    %847 = vmatprep.subr.mxu0 0.0
    %848 = vmatpush1.msra.mxu0 0.0
    %849 = vmatprep.subr.mxu0 0.0
    %850 = vmatpush1.msra.mxu0 0.0
    %851 = vmatprep.subr.mxu0 0.0
    %852 = vmatpush1.msra.mxu0 0.0
    %853 = vmatprep.subr.mxu0 0.0
    %854 = vmatpush1.msra.mxu0 0.0
    %855 = vmatprep.subr.mxu0 0.0
    %856 = vmatpush1.msra.mxu0 0.0
    %857 = vmatprep.subr.mxu0 0.0
    %858 = vmatpush1.msra.mxu0 0.0
    %859 = vmatprep.subr.mxu0 0.0
    %860 = vmatpush1.msra.mxu0 0.0
    %861 = vmatprep.subr.mxu0 0.0
    %862 = vmatpush1.msra.mxu0 0.0
    %863 = vmatprep.subr.mxu0 0.0
    %864 = vmatpush1.msra.mxu0 0.0
    %865 = vmatprep.subr.mxu0 0.0
    %866 = vmatpush1.msra.mxu0 0.0
    %867 = vmatprep.subr.mxu0 0.0
    %868 = vmatpush1.msra.mxu0 0.0
    %869 = vmatprep.subr.mxu0 0.0
    %870 = vmatpush1.msra.mxu0 0.0
    %871 = vmatprep.subr.mxu0 0.0
    %872 = vmatpush1.msra.mxu0 0.0
    %873 = vmatprep.subr.mxu0 0.0
    %874 = vmatpush1.msra.mxu0 0.0
    %875 = vmatprep.subr.mxu0 0.0
    %876 = vmatpush1.msra.mxu0 0.0
    %877 = vmatprep.subr.mxu0 0.0
    %878 = vmatpush1.msra.mxu0 0.0
    %879 = vmatprep.subr.mxu0 0.0
    %880 = vmatpush1.msra.mxu0 0.0
    %881 = vmatprep.mubr.f32.mxu0 0.0
    %882 = vmatmul.mubr.f32.gmra.mrb[0].mxu0 %v815
    %v883 = vpop.f32.mrb[0].mxu0
    %v884 = vadd.f32 0.0, %v883
    %v885 = vpop.f32.mrb[0].mxu0
    %886 = vdwg.mxu0
    %v888 = vrot.slane %v884, 1
    %v889 = vrot.slane %v884, 2
    %v890 = vrot.slane %v884, 3
    %v891 = vrot.slane %v884, 4
    %v892 = vrot.slane %v884, 5
    %v893 = vrot.slane %v884, 6
    %v894 = vrot.slane %v884, 7
    %v903 = vadd.f32 %v783, %v884
    %v904 = vadd.f32 %v784, %v888
    %v905 = vadd.f32 %v785, %v889
    %v906 = vadd.f32 %v786, %v890
    %v907 = vadd.f32 %v787, %v891
    %v908 = vadd.f32 %v788, %v892
    %v909 = vadd.f32 %v789, %v893
    %v910 = vadd.f32 %v790, %v894
    %v911 = vxor.u32 %v903, 2147483648
    %v912 = vxor.u32 %v904, 2147483648
    %v913 = vxor.u32 %v905, 2147483648
    %v914 = vxor.u32 %v906, 2147483648
    %v915 = vxor.u32 %v907, 2147483648
    %v916 = vxor.u32 %v908, 2147483648
    %v917 = vxor.u32 %v909, 2147483648
    %v918 = vxor.u32 %v910, 2147483648
    %v919 = vmul.f32 %v911, 1.442695
    %v920 = vpow.pop %v919
    %v921 = vmul.f32 %v912, 1.442695
    %v922 = vpow.pop %v921
    %v923 = vmul.f32 %v913, 1.442695
    %v924 = vpow.pop %v923
    %v925 = vmul.f32 %v914, 1.442695
    %v926 = vpow.pop %v925
    %v927 = vmul.f32 %v915, 1.442695
    %v928 = vpow.pop %v927
    %v929 = vmul.f32 %v916, 1.442695
    %v930 = vpow.pop %v929
    %v931 = vmul.f32 %v917, 1.442695
    %v932 = vpow.pop %v931
    %v933 = vmul.f32 %v918, 1.442695
    %v934 = vpow.pop %v933
    %v935 = vadd.f32 %v920, 1.0
    %v936 = vadd.f32 %v922, 1.0
    %v937 = vadd.f32 %v924, 1.0
    %v938 = vadd.f32 %v926, 1.0
    %v939 = vadd.f32 %v928, 1.0
    %v940 = vadd.f32 %v930, 1.0
    %v941 = vadd.f32 %v932, 1.0
    %v942 = vadd.f32 %v934, 1.0
    %v943 = vrcp.pop %v935
    %v944 = vmul.f32 1.0, %v943
    %v945 = vrcp.pop %v936
    %v946 = vmul.f32 1.0, %v945
    %v947 = vrcp.pop %v937
    %v948 = vmul.f32 1.0, %v947
    %v949 = vrcp.pop %v938
    %v950 = vmul.f32 1.0, %v949
    %v951 = vrcp.pop %v939
    %v952 = vmul.f32 1.0, %v951
    %v953 = vrcp.pop %v940
    %v954 = vmul.f32 1.0, %v953
    %v955 = vrcp.pop %v941
    %v956 = vmul.f32 1.0, %v955
    %v957 = vrcp.pop %v942
    %v958 = vmul.f32 1.0, %v957
    %v959 = vtanh.pop %v903
    %v960 = vtanh.pop %v904
    %v961 = vtanh.pop %v905
    %v962 = vtanh.pop %v906
    %v963 = vtanh.pop %v907
    %v964 = vtanh.pop %v908
    %v965 = vtanh.pop %v909
    %v966 = vtanh.pop %v910
    %v967 = vmul.f32 %v944, %v727
    %v968 = vmul.f32 %v946, %v728
    %v969 = vmul.f32 %v948, %v729
    %v970 = vmul.f32 %v950, %v730
    %v971 = vmul.f32 %v952, %v731
    %v972 = vmul.f32 %v954, %v732
    %v973 = vmul.f32 %v956, %v733
    %v974 = vmul.f32 %v958, %v734
    %983 = vrot.lane.b32.xlu0 %v959, 32
    %v984 = vpop.permute.xlu0 %983
    %985 = vrot.lane.b32.xlu0 %v960, 32
    %v986 = vpop.permute.xlu0 %985
    %987 = vrot.lane.b32.xlu0 %v961, 32
    %v988 = vpop.permute.xlu0 %987
    %989 = vrot.lane.b32.xlu0 %v962, 32
    %v990 = vpop.permute.xlu0 %989
    %991 = vrot.lane.b32.xlu0 %v963, 32
    %v992 = vpop.permute.xlu0 %991
    %993 = vrot.lane.b32.xlu0 %v964, 32
    %v994 = vpop.permute.xlu0 %993
    %995 = vrot.lane.b32.xlu0 %v965, 32
    %v996 = vpop.permute.xlu0 %995
    %997 = vrot.lane.b32.xlu0 %v966, 32
    %v998 = vpop.permute.xlu0 %997
    %v1007 = vmul.f32 %v944, %v984
    %v1008 = vmul.f32 %v946, %v986
    %v1009 = vmul.f32 %v948, %v988
    %v1010 = vmul.f32 %v950, %v990
    %v1011 = vmul.f32 %v952, %v992
    %v1012 = vmul.f32 %v954, %v994
    %v1013 = vmul.f32 %v956, %v996
    %v1014 = vmul.f32 %v958, %v998
    %1023 = vrot.lane.b32.xlu0 %v1007, 32
    %v1024 = vpop.permute.xlu0 %1023
    %1025 = vrot.lane.b32.xlu0 %v1008, 32
    %v1026 = vpop.permute.xlu0 %1025
    %1027 = vrot.lane.b32.xlu0 %v1009, 32
    %v1028 = vpop.permute.xlu0 %1027
    %1029 = vrot.lane.b32.xlu0 %v1010, 32
    %v1030 = vpop.permute.xlu0 %1029
    %1031 = vrot.lane.b32.xlu0 %v1011, 32
    %v1032 = vpop.permute.xlu0 %1031
    %1033 = vrot.lane.b32.xlu0 %v1012, 32
    %v1034 = vpop.permute.xlu0 %1033
    %1035 = vrot.lane.b32.xlu0 %v1013, 32
    %v1036 = vpop.permute.xlu0 %1035
    %1037 = vrot.lane.b32.xlu0 %v1014, 32
    %v1038 = vpop.permute.xlu0 %1037
    %v1047 = vadd.f32 %v967, %v1024
    %v1048 = vadd.f32 %v968, %v1026
    %v1049 = vadd.f32 %v969, %v1028
    %v1050 = vadd.f32 %v970, %v1030
    %v1051 = vadd.f32 %v971, %v1032
    %v1052 = vadd.f32 %v972, %v1034
    %v1053 = vadd.f32 %v973, %v1036
    %v1054 = vadd.f32 %v974, %v1038
    %v1055 = vtanh.pop %v1047
    %v1056 = vtanh.pop %v1048
    %v1057 = vtanh.pop %v1049
    %v1058 = vtanh.pop %v1050
    %v1059 = vtanh.pop %v1051
    %v1060 = vtanh.pop %v1052
    %v1061 = vtanh.pop %v1053
    %v1062 = vtanh.pop %v1054
    %1071 = vrot.lane.b32.xlu0 %v1055, 32
    %v1072 = vpop.permute.xlu0 %1071
    %1073 = vrot.lane.b32.xlu0 %v1056, 32
    %v1074 = vpop.permute.xlu0 %1073
    %1075 = vrot.lane.b32.xlu0 %v1057, 32
    %v1076 = vpop.permute.xlu0 %1075
    %1077 = vrot.lane.b32.xlu0 %v1058, 32
    %v1078 = vpop.permute.xlu0 %1077
    %1079 = vrot.lane.b32.xlu0 %v1059, 32
    %v1080 = vpop.permute.xlu0 %1079
    %1081 = vrot.lane.b32.xlu0 %v1060, 32
    %v1082 = vpop.permute.xlu0 %1081
    %1083 = vrot.lane.b32.xlu0 %v1061, 32
    %v1084 = vpop.permute.xlu0 %1083
    %1085 = vrot.lane.b32.xlu0 %v1062, 32
    %v1086 = vpop.permute.xlu0 %1085
    %v1095 = vmul.f32 %v944, %v1072
    %v1096 = vmul.f32 %v946, %v1074
    %v1097 = vmul.f32 %v948, %v1076
    %v1098 = vmul.f32 %v950, %v1078
    %v1099 = vmul.f32 %v952, %v1080
    %v1100 = vmul.f32 %v954, %v1082
    %v1101 = vmul.f32 %v956, %v1084
    %v1102 = vmul.f32 %v958, %v1086
    %v1103 = vld [vmem:[#allocation2 + $0x3] sm:$0x1]
    %v1104 = vld [vmem:[#allocation2 + $0xb] sm:$0x1]
    %v1105 = vld [vmem:[#allocation2 + $0x13] sm:$0x1]
    %v1106 = vld [vmem:[#allocation2 + $0x1b] sm:$0x1]
    %v1107 = vld [vmem:[#allocation2 + $0x23] sm:$0x1]
    %v1108 = vld [vmem:[#allocation2 + $0x2b] sm:$0x1]
    %v1109 = vld [vmem:[#allocation2 + $0x33] sm:$0x1]
    %v1110 = vld [vmem:[#allocation2 + $0x3b] sm:$0x1]
    %v1119 = vrot.slane %v1096, 7
    %v1120 = vsel %vm473, %v1119, %v1095
    %v1121 = vrot.slane %v1097, 6
    %v1122 = vsel %vm476, %v1121, %v1120
    %v1123 = vrot.slane %v1098, 5
    %v1124 = vsel %vm479, %v1123, %v1122
    %v1125 = vrot.slane %v1099, 4
    %v1126 = vsel %vm482, %v1125, %v1124
    %v1127 = vrot.slane %v1100, 3
    %v1128 = vsel %vm485, %v1127, %v1126
    %v1129 = vrot.slane %v1101, 2
    %v1130 = vsel %vm488, %v1129, %v1128
    %v1131 = vrot.slane %v1102, 1
    %v1132 = vsel %vm491, %v1131, %v1130
    %1133 = vrot.lane.b32.xlu0 %v1132, 64
    %v1134 = vpop.permute.xlu0 %1133
    %v1135 = vsel %vm166, %v1134, 0
    %1137 = vmatprep.subr.mxu0 0.0
    %1138 = vmatpush1.msra.mxu0 %v154
    %1139 = vmatprep.subr.mxu0 0.0
    %1140 = vmatpush1.msra.mxu0 %v155
    %1141 = vmatprep.subr.mxu0 0.0
    %1142 = vmatpush1.msra.mxu0 %v156
    %1143 = vmatprep.subr.mxu0 0.0
    %1144 = vmatpush1.msra.mxu0 %v157
    %1145 = vmatprep.subr.mxu0 0.0
    %1146 = vmatpush1.msra.mxu0 0.0
    %1147 = vmatprep.subr.mxu0 0.0
    %1148 = vmatpush1.msra.mxu0 0.0
    %1149 = vmatprep.subr.mxu0 0.0
    %1150 = vmatpush1.msra.mxu0 0.0
    %1151 = vmatprep.subr.mxu0 0.0
    %1152 = vmatpush1.msra.mxu0 0.0
    %1153 = vmatprep.subr.mxu0 0.0
    %1154 = vmatpush1.msra.mxu0 0.0
    %1155 = vmatprep.subr.mxu0 0.0
    %1156 = vmatpush1.msra.mxu0 0.0
    %1157 = vmatprep.subr.mxu0 0.0
    %1158 = vmatpush1.msra.mxu0 0.0
    %1159 = vmatprep.subr.mxu0 0.0
    %1160 = vmatpush1.msra.mxu0 0.0
    %1161 = vmatprep.subr.mxu0 0.0
    %1162 = vmatpush1.msra.mxu0 0.0
    %1163 = vmatprep.subr.mxu0 0.0
    %1164 = vmatpush1.msra.mxu0 0.0
    %1165 = vmatprep.subr.mxu0 0.0
    %1166 = vmatpush1.msra.mxu0 0.0
    %1167 = vmatprep.subr.mxu0 0.0
    %1168 = vmatpush1.msra.mxu0 0.0
    %1169 = vmatprep.subr.mxu0 0.0
    %1170 = vmatpush1.msra.mxu0 0.0
    %1171 = vmatprep.subr.mxu0 0.0
    %1172 = vmatpush1.msra.mxu0 0.0
    %1173 = vmatprep.subr.mxu0 0.0
    %1174 = vmatpush1.msra.mxu0 0.0
    %1175 = vmatprep.subr.mxu0 0.0
    %1176 = vmatpush1.msra.mxu0 0.0
    %1177 = vmatprep.subr.mxu0 0.0
    %1178 = vmatpush1.msra.mxu0 0.0
    %1179 = vmatprep.subr.mxu0 0.0
    %1180 = vmatpush1.msra.mxu0 0.0
    %1181 = vmatprep.subr.mxu0 0.0
    %1182 = vmatpush1.msra.mxu0 0.0
    %1183 = vmatprep.subr.mxu0 0.0
    %1184 = vmatpush1.msra.mxu0 0.0
    %1185 = vmatprep.subr.mxu0 0.0
    %1186 = vmatpush1.msra.mxu0 0.0
    %1187 = vmatprep.subr.mxu0 0.0
    %1188 = vmatpush1.msra.mxu0 0.0
    %1189 = vmatprep.subr.mxu0 0.0
    %1190 = vmatpush1.msra.mxu0 0.0
    %1191 = vmatprep.subr.mxu0 0.0
    %1192 = vmatpush1.msra.mxu0 0.0
    %1193 = vmatprep.subr.mxu0 0.0
    %1194 = vmatpush1.msra.mxu0 0.0
    %1195 = vmatprep.subr.mxu0 0.0
    %1196 = vmatpush1.msra.mxu0 0.0
    %1197 = vmatprep.subr.mxu0 0.0
    %1198 = vmatpush1.msra.mxu0 0.0
    %1199 = vmatprep.subr.mxu0 0.0
    %1200 = vmatpush1.msra.mxu0 0.0
    %1201 = vmatprep.mubr.f32.mxu0 0.0
    %1202 = vmatmul.mubr.f32.gmra.mrb[0].mxu0 %v1135
    %v1203 = vpop.f32.mrb[0].mxu0
    %v1204 = vadd.f32 0.0, %v1203
    %v1205 = vpop.f32.mrb[0].mxu0
    %1206 = vdwg.mxu0
    %v1208 = vrot.slane %v1204, 1
    %v1209 = vrot.slane %v1204, 2
    %v1210 = vrot.slane %v1204, 3
    %v1211 = vrot.slane %v1204, 4
    %v1212 = vrot.slane %v1204, 5
    %v1213 = vrot.slane %v1204, 6
    %v1214 = vrot.slane %v1204, 7
    %v1223 = vadd.f32 %v1103, %v1204
    %v1224 = vadd.f32 %v1104, %v1208
    %v1225 = vadd.f32 %v1105, %v1209
    %v1226 = vadd.f32 %v1106, %v1210
    %v1227 = vadd.f32 %v1107, %v1211
    %v1228 = vadd.f32 %v1108, %v1212
    %v1229 = vadd.f32 %v1109, %v1213
    %v1230 = vadd.f32 %v1110, %v1214
    %v1231 = vxor.u32 %v1223, 2147483648
    %v1232 = vxor.u32 %v1224, 2147483648
    %v1233 = vxor.u32 %v1225, 2147483648
    %v1234 = vxor.u32 %v1226, 2147483648
    %v1235 = vxor.u32 %v1227, 2147483648
    %v1236 = vxor.u32 %v1228, 2147483648
    %v1237 = vxor.u32 %v1229, 2147483648
    %v1238 = vxor.u32 %v1230, 2147483648
    %v1239 = vmul.f32 %v1231, 1.442695
    %v1240 = vpow.pop %v1239
    %v1241 = vmul.f32 %v1232, 1.442695
    %v1242 = vpow.pop %v1241
    %v1243 = vmul.f32 %v1233, 1.442695
    %v1244 = vpow.pop %v1243
    %v1245 = vmul.f32 %v1234, 1.442695
    %v1246 = vpow.pop %v1245
    %v1247 = vmul.f32 %v1235, 1.442695
    %v1248 = vpow.pop %v1247
    %v1249 = vmul.f32 %v1236, 1.442695
    %v1250 = vpow.pop %v1249
    %v1251 = vmul.f32 %v1237, 1.442695
    %v1252 = vpow.pop %v1251
    %v1253 = vmul.f32 %v1238, 1.442695
    %v1254 = vpow.pop %v1253
    %v1255 = vadd.f32 %v1240, 1.0
    %v1256 = vadd.f32 %v1242, 1.0
    %v1257 = vadd.f32 %v1244, 1.0
    %v1258 = vadd.f32 %v1246, 1.0
    %v1259 = vadd.f32 %v1248, 1.0
    %v1260 = vadd.f32 %v1250, 1.0
    %v1261 = vadd.f32 %v1252, 1.0
    %v1262 = vadd.f32 %v1254, 1.0
    %v1263 = vrcp.pop %v1255
    %v1264 = vmul.f32 1.0, %v1263
    %v1265 = vrcp.pop %v1256
    %v1266 = vmul.f32 1.0, %v1265
    %v1267 = vrcp.pop %v1257
    %v1268 = vmul.f32 1.0, %v1267
    %v1269 = vrcp.pop %v1258
    %v1270 = vmul.f32 1.0, %v1269
    %v1271 = vrcp.pop %v1259
    %v1272 = vmul.f32 1.0, %v1271
    %v1273 = vrcp.pop %v1260
    %v1274 = vmul.f32 1.0, %v1273
    %v1275 = vrcp.pop %v1261
    %v1276 = vmul.f32 1.0, %v1275
    %v1277 = vrcp.pop %v1262
    %v1278 = vmul.f32 1.0, %v1277
    %v1279 = vtanh.pop %v1223
    %v1280 = vtanh.pop %v1224
    %v1281 = vtanh.pop %v1225
    %v1282 = vtanh.pop %v1226
    %v1283 = vtanh.pop %v1227
    %v1284 = vtanh.pop %v1228
    %v1285 = vtanh.pop %v1229
    %v1286 = vtanh.pop %v1230
    %v1287 = vmul.f32 %v1264, %v1047
    %v1288 = vmul.f32 %v1266, %v1048
    %v1289 = vmul.f32 %v1268, %v1049
    %v1290 = vmul.f32 %v1270, %v1050
    %v1291 = vmul.f32 %v1272, %v1051
    %v1292 = vmul.f32 %v1274, %v1052
    %v1293 = vmul.f32 %v1276, %v1053
    %v1294 = vmul.f32 %v1278, %v1054
    %1303 = vrot.lane.b32.xlu0 %v1279, 32
    %v1304 = vpop.permute.xlu0 %1303
    %1305 = vrot.lane.b32.xlu0 %v1280, 32
    %v1306 = vpop.permute.xlu0 %1305
    %1307 = vrot.lane.b32.xlu0 %v1281, 32
    %v1308 = vpop.permute.xlu0 %1307
    %1309 = vrot.lane.b32.xlu0 %v1282, 32
    %v1310 = vpop.permute.xlu0 %1309
    %1311 = vrot.lane.b32.xlu0 %v1283, 32
    %v1312 = vpop.permute.xlu0 %1311
    %1313 = vrot.lane.b32.xlu0 %v1284, 32
    %v1314 = vpop.permute.xlu0 %1313
    %1315 = vrot.lane.b32.xlu0 %v1285, 32
    %v1316 = vpop.permute.xlu0 %1315
    %1317 = vrot.lane.b32.xlu0 %v1286, 32
    %v1318 = vpop.permute.xlu0 %1317
    %v1327 = vmul.f32 %v1264, %v1304
    %v1328 = vmul.f32 %v1266, %v1306
    %v1329 = vmul.f32 %v1268, %v1308
    %v1330 = vmul.f32 %v1270, %v1310
    %v1331 = vmul.f32 %v1272, %v1312
    %v1332 = vmul.f32 %v1274, %v1314
    %v1333 = vmul.f32 %v1276, %v1316
    %v1334 = vmul.f32 %v1278, %v1318
    %1343 = vrot.lane.b32.xlu0 %v1327, 32
    %v1344 = vpop.permute.xlu0 %1343
    %1345 = vrot.lane.b32.xlu0 %v1328, 32
    %v1346 = vpop.permute.xlu0 %1345
    %1347 = vrot.lane.b32.xlu0 %v1329, 32
    %v1348 = vpop.permute.xlu0 %1347
    %1349 = vrot.lane.b32.xlu0 %v1330, 32
    %v1350 = vpop.permute.xlu0 %1349
    %1351 = vrot.lane.b32.xlu0 %v1331, 32
    %v1352 = vpop.permute.xlu0 %1351
    %1353 = vrot.lane.b32.xlu0 %v1332, 32
    %v1354 = vpop.permute.xlu0 %1353
    %1355 = vrot.lane.b32.xlu0 %v1333, 32
    %v1356 = vpop.permute.xlu0 %1355
    %1357 = vrot.lane.b32.xlu0 %v1334, 32
    %v1358 = vpop.permute.xlu0 %1357
    %v1367 = vadd.f32 %v1287, %v1344
    %v1368 = vadd.f32 %v1288, %v1346
    %v1369 = vadd.f32 %v1289, %v1348
    %v1370 = vadd.f32 %v1290, %v1350
    %v1371 = vadd.f32 %v1291, %v1352
    %v1372 = vadd.f32 %v1292, %v1354
    %v1373 = vadd.f32 %v1293, %v1356
    %v1374 = vadd.f32 %v1294, %v1358
    %v1375 = vtanh.pop %v1367
    %v1376 = vtanh.pop %v1368
    %v1377 = vtanh.pop %v1369
    %v1378 = vtanh.pop %v1370
    %v1379 = vtanh.pop %v1371
    %v1380 = vtanh.pop %v1372
    %v1381 = vtanh.pop %v1373
    %v1382 = vtanh.pop %v1374
    %1391 = vrot.lane.b32.xlu0 %v1375, 32
    %v1392 = vpop.permute.xlu0 %1391
    %1393 = vrot.lane.b32.xlu0 %v1376, 32
    %v1394 = vpop.permute.xlu0 %1393
    %1395 = vrot.lane.b32.xlu0 %v1377, 32
    %v1396 = vpop.permute.xlu0 %1395
    %1397 = vrot.lane.b32.xlu0 %v1378, 32
    %v1398 = vpop.permute.xlu0 %1397
    %1399 = vrot.lane.b32.xlu0 %v1379, 32
    %v1400 = vpop.permute.xlu0 %1399
    %1401 = vrot.lane.b32.xlu0 %v1380, 32
    %v1402 = vpop.permute.xlu0 %1401
    %1403 = vrot.lane.b32.xlu0 %v1381, 32
    %v1404 = vpop.permute.xlu0 %1403
    %1405 = vrot.lane.b32.xlu0 %v1382, 32
    %v1406 = vpop.permute.xlu0 %1405
    %v1415 = vmul.f32 %v1264, %v1392
    %v1416 = vmul.f32 %v1266, %v1394
    %v1417 = vmul.f32 %v1268, %v1396
    %v1418 = vmul.f32 %v1270, %v1398
    %v1419 = vmul.f32 %v1272, %v1400
    %v1420 = vmul.f32 %v1274, %v1402
    %v1421 = vmul.f32 %v1276, %v1404
    %v1422 = vmul.f32 %v1278, %v1406
    %v1423 = vld [vmem:[#allocation2 + $0x4] sm:$0x1]
    %v1424 = vld [vmem:[#allocation2 + $0xc] sm:$0x1]
    %v1425 = vld [vmem:[#allocation2 + $0x14] sm:$0x1]
    %v1426 = vld [vmem:[#allocation2 + $0x1c] sm:$0x1]
    %v1427 = vld [vmem:[#allocation2 + $0x24] sm:$0x1]
    %v1428 = vld [vmem:[#allocation2 + $0x2c] sm:$0x1]
    %v1429 = vld [vmem:[#allocation2 + $0x34] sm:$0x1]
    %v1430 = vld [vmem:[#allocation2 + $0x3c] sm:$0x1]
    %v1439 = vrot.slane %v1416, 7
    %v1440 = vsel %vm473, %v1439, %v1415
    %v1441 = vrot.slane %v1417, 6
    %v1442 = vsel %vm476, %v1441, %v1440
    %v1443 = vrot.slane %v1418, 5
    %v1444 = vsel %vm479, %v1443, %v1442
    %v1445 = vrot.slane %v1419, 4
    %v1446 = vsel %vm482, %v1445, %v1444
    %v1447 = vrot.slane %v1420, 3
    %v1448 = vsel %vm485, %v1447, %v1446
    %v1449 = vrot.slane %v1421, 2
    %v1450 = vsel %vm488, %v1449, %v1448
    %v1451 = vrot.slane %v1422, 1
    %v1452 = vsel %vm491, %v1451, %v1450
    %1453 = vrot.lane.b32.xlu0 %v1452, 64
    %v1454 = vpop.permute.xlu0 %1453
    %v1455 = vsel %vm166, %v1454, 0
    %1457 = vmatprep.subr.mxu0 0.0
    %1458 = vmatpush1.msra.mxu0 %v154
    %1459 = vmatprep.subr.mxu0 0.0
    %1460 = vmatpush1.msra.mxu0 %v155
    %1461 = vmatprep.subr.mxu0 0.0
    %1462 = vmatpush1.msra.mxu0 %v156
    %1463 = vmatprep.subr.mxu0 0.0
    %1464 = vmatpush1.msra.mxu0 %v157
    %1465 = vmatprep.subr.mxu0 0.0
    %1466 = vmatpush1.msra.mxu0 0.0
    %1467 = vmatprep.subr.mxu0 0.0
    %1468 = vmatpush1.msra.mxu0 0.0
    %1469 = vmatprep.subr.mxu0 0.0
    %1470 = vmatpush1.msra.mxu0 0.0
    %1471 = vmatprep.subr.mxu0 0.0
    %1472 = vmatpush1.msra.mxu0 0.0
    %1473 = vmatprep.subr.mxu0 0.0
    %1474 = vmatpush1.msra.mxu0 0.0
    %1475 = vmatprep.subr.mxu0 0.0
    %1476 = vmatpush1.msra.mxu0 0.0
    %1477 = vmatprep.subr.mxu0 0.0
    %1478 = vmatpush1.msra.mxu0 0.0
    %1479 = vmatprep.subr.mxu0 0.0
    %1480 = vmatpush1.msra.mxu0 0.0
    %1481 = vmatprep.subr.mxu0 0.0
    %1482 = vmatpush1.msra.mxu0 0.0
    %1483 = vmatprep.subr.mxu0 0.0
    %1484 = vmatpush1.msra.mxu0 0.0
    %1485 = vmatprep.subr.mxu0 0.0
    %1486 = vmatpush1.msra.mxu0 0.0
    %1487 = vmatprep.subr.mxu0 0.0
    %1488 = vmatpush1.msra.mxu0 0.0
    %1489 = vmatprep.subr.mxu0 0.0
    %1490 = vmatpush1.msra.mxu0 0.0
    %1491 = vmatprep.subr.mxu0 0.0
    %1492 = vmatpush1.msra.mxu0 0.0
    %1493 = vmatprep.subr.mxu0 0.0
    %1494 = vmatpush1.msra.mxu0 0.0
    %1495 = vmatprep.subr.mxu0 0.0
    %1496 = vmatpush1.msra.mxu0 0.0
    %1497 = vmatprep.subr.mxu0 0.0
    %1498 = vmatpush1.msra.mxu0 0.0
    %1499 = vmatprep.subr.mxu0 0.0
    %1500 = vmatpush1.msra.mxu0 0.0
    %1501 = vmatprep.subr.mxu0 0.0
    %1502 = vmatpush1.msra.mxu0 0.0
    %1503 = vmatprep.subr.mxu0 0.0
    %1504 = vmatpush1.msra.mxu0 0.0
    %1505 = vmatprep.subr.mxu0 0.0
    %1506 = vmatpush1.msra.mxu0 0.0
    %1507 = vmatprep.subr.mxu0 0.0
    %1508 = vmatpush1.msra.mxu0 0.0
    %1509 = vmatprep.subr.mxu0 0.0
    %1510 = vmatpush1.msra.mxu0 0.0
    %1511 = vmatprep.subr.mxu0 0.0
    %1512 = vmatpush1.msra.mxu0 0.0
    %1513 = vmatprep.subr.mxu0 0.0
    %1514 = vmatpush1.msra.mxu0 0.0
    %1515 = vmatprep.subr.mxu0 0.0
    %1516 = vmatpush1.msra.mxu0 0.0
    %1517 = vmatprep.subr.mxu0 0.0
    %1518 = vmatpush1.msra.mxu0 0.0
    %1519 = vmatprep.subr.mxu0 0.0
    %1520 = vmatpush1.msra.mxu0 0.0
    %1521 = vmatprep.mubr.f32.mxu0 0.0
    %1522 = vmatmul.mubr.f32.gmra.mrb[0].mxu0 %v1455
    %v1523 = vpop.f32.mrb[0].mxu0
    %v1524 = vadd.f32 0.0, %v1523
    %v1525 = vpop.f32.mrb[0].mxu0
    %1526 = vdwg.mxu0
    %v1528 = vrot.slane %v1524, 1
    %v1529 = vrot.slane %v1524, 2
    %v1530 = vrot.slane %v1524, 3
    %v1531 = vrot.slane %v1524, 4
    %v1532 = vrot.slane %v1524, 5
    %v1533 = vrot.slane %v1524, 6
    %v1534 = vrot.slane %v1524, 7
    %v1543 = vadd.f32 %v1423, %v1524
    %v1544 = vadd.f32 %v1424, %v1528
    %v1545 = vadd.f32 %v1425, %v1529
    %v1546 = vadd.f32 %v1426, %v1530
    %v1547 = vadd.f32 %v1427, %v1531
    %v1548 = vadd.f32 %v1428, %v1532
    %v1549 = vadd.f32 %v1429, %v1533
    %v1550 = vadd.f32 %v1430, %v1534
    %v1551 = vxor.u32 %v1543, 2147483648
    %v1552 = vxor.u32 %v1544, 2147483648
    %v1553 = vxor.u32 %v1545, 2147483648
    %v1554 = vxor.u32 %v1546, 2147483648
    %v1555 = vxor.u32 %v1547, 2147483648
    %v1556 = vxor.u32 %v1548, 2147483648
    %v1557 = vxor.u32 %v1549, 2147483648
    %v1558 = vxor.u32 %v1550, 2147483648
    %v1559 = vmul.f32 %v1551, 1.442695
    %v1560 = vpow.pop %v1559
    %v1561 = vmul.f32 %v1552, 1.442695
    %v1562 = vpow.pop %v1561
    %v1563 = vmul.f32 %v1553, 1.442695
    %v1564 = vpow.pop %v1563
    %v1565 = vmul.f32 %v1554, 1.442695
    %v1566 = vpow.pop %v1565
    %v1567 = vmul.f32 %v1555, 1.442695
    %v1568 = vpow.pop %v1567
    %v1569 = vmul.f32 %v1556, 1.442695
    %v1570 = vpow.pop %v1569
    %v1571 = vmul.f32 %v1557, 1.442695
    %v1572 = vpow.pop %v1571
    %v1573 = vmul.f32 %v1558, 1.442695
    %v1574 = vpow.pop %v1573
    %v1575 = vadd.f32 %v1560, 1.0
    %v1576 = vadd.f32 %v1562, 1.0
    %v1577 = vadd.f32 %v1564, 1.0
    %v1578 = vadd.f32 %v1566, 1.0
    %v1579 = vadd.f32 %v1568, 1.0
    %v1580 = vadd.f32 %v1570, 1.0
    %v1581 = vadd.f32 %v1572, 1.0
    %v1582 = vadd.f32 %v1574, 1.0
    %v1583 = vrcp.pop %v1575
    %v1584 = vmul.f32 1.0, %v1583
    %v1585 = vrcp.pop %v1576
    %v1586 = vmul.f32 1.0, %v1585
    %v1587 = vrcp.pop %v1577
    %v1588 = vmul.f32 1.0, %v1587
    %v1589 = vrcp.pop %v1578
    %v1590 = vmul.f32 1.0, %v1589
    %v1591 = vrcp.pop %v1579
    %v1592 = vmul.f32 1.0, %v1591
    %v1593 = vrcp.pop %v1580
    %v1594 = vmul.f32 1.0, %v1593
    %v1595 = vrcp.pop %v1581
    %v1596 = vmul.f32 1.0, %v1595
    %v1597 = vrcp.pop %v1582
    %v1598 = vmul.f32 1.0, %v1597
    %v1599 = vtanh.pop %v1543
    %v1600 = vtanh.pop %v1544
    %v1601 = vtanh.pop %v1545
    %v1602 = vtanh.pop %v1546
    %v1603 = vtanh.pop %v1547
    %v1604 = vtanh.pop %v1548
    %v1605 = vtanh.pop %v1549
    %v1606 = vtanh.pop %v1550
    %v1607 = vmul.f32 %v1584, %v1367
    %v1608 = vmul.f32 %v1586, %v1368
    %v1609 = vmul.f32 %v1588, %v1369
    %v1610 = vmul.f32 %v1590, %v1370
    %v1611 = vmul.f32 %v1592, %v1371
    %v1612 = vmul.f32 %v1594, %v1372
    %v1613 = vmul.f32 %v1596, %v1373
    %v1614 = vmul.f32 %v1598, %v1374
    %1623 = vrot.lane.b32.xlu0 %v1599, 32
    %v1624 = vpop.permute.xlu0 %1623
    %1625 = vrot.lane.b32.xlu0 %v1600, 32
    %v1626 = vpop.permute.xlu0 %1625
    %1627 = vrot.lane.b32.xlu0 %v1601, 32
    %v1628 = vpop.permute.xlu0 %1627
    %1629 = vrot.lane.b32.xlu0 %v1602, 32
    %v1630 = vpop.permute.xlu0 %1629
    %1631 = vrot.lane.b32.xlu0 %v1603, 32
    %v1632 = vpop.permute.xlu0 %1631
    %1633 = vrot.lane.b32.xlu0 %v1604, 32
    %v1634 = vpop.permute.xlu0 %1633
    %1635 = vrot.lane.b32.xlu0 %v1605, 32
    %v1636 = vpop.permute.xlu0 %1635
    %1637 = vrot.lane.b32.xlu0 %v1606, 32
    %v1638 = vpop.permute.xlu0 %1637
    %v1647 = vmul.f32 %v1584, %v1624
    %v1648 = vmul.f32 %v1586, %v1626
    %v1649 = vmul.f32 %v1588, %v1628
    %v1650 = vmul.f32 %v1590, %v1630
    %v1651 = vmul.f32 %v1592, %v1632
    %v1652 = vmul.f32 %v1594, %v1634
    %v1653 = vmul.f32 %v1596, %v1636
    %v1654 = vmul.f32 %v1598, %v1638
    %1663 = vrot.lane.b32.xlu0 %v1647, 32
    %v1664 = vpop.permute.xlu0 %1663
    %1665 = vrot.lane.b32.xlu0 %v1648, 32
    %v1666 = vpop.permute.xlu0 %1665
    %1667 = vrot.lane.b32.xlu0 %v1649, 32
    %v1668 = vpop.permute.xlu0 %1667
    %1669 = vrot.lane.b32.xlu0 %v1650, 32
    %v1670 = vpop.permute.xlu0 %1669
    %1671 = vrot.lane.b32.xlu0 %v1651, 32
    %v1672 = vpop.permute.xlu0 %1671
    %1673 = vrot.lane.b32.xlu0 %v1652, 32
    %v1674 = vpop.permute.xlu0 %1673
    %1675 = vrot.lane.b32.xlu0 %v1653, 32
    %v1676 = vpop.permute.xlu0 %1675
    %1677 = vrot.lane.b32.xlu0 %v1654, 32
    %v1678 = vpop.permute.xlu0 %1677
    %v1687 = vadd.f32 %v1607, %v1664
    %v1688 = vadd.f32 %v1608, %v1666
    %v1689 = vadd.f32 %v1609, %v1668
    %v1690 = vadd.f32 %v1610, %v1670
    %v1691 = vadd.f32 %v1611, %v1672
    %v1692 = vadd.f32 %v1612, %v1674
    %v1693 = vadd.f32 %v1613, %v1676
    %v1694 = vadd.f32 %v1614, %v1678
    %v1695 = vtanh.pop %v1687
    %v1696 = vtanh.pop %v1688
    %v1697 = vtanh.pop %v1689
    %v1698 = vtanh.pop %v1690
    %v1699 = vtanh.pop %v1691
    %v1700 = vtanh.pop %v1692
    %v1701 = vtanh.pop %v1693
    %v1702 = vtanh.pop %v1694
    %1711 = vrot.lane.b32.xlu0 %v1695, 32
    %v1712 = vpop.permute.xlu0 %1711
    %1713 = vrot.lane.b32.xlu0 %v1696, 32
    %v1714 = vpop.permute.xlu0 %1713
    %1715 = vrot.lane.b32.xlu0 %v1697, 32
    %v1716 = vpop.permute.xlu0 %1715
    %1717 = vrot.lane.b32.xlu0 %v1698, 32
    %v1718 = vpop.permute.xlu0 %1717
    %1719 = vrot.lane.b32.xlu0 %v1699, 32
    %v1720 = vpop.permute.xlu0 %1719
    %1721 = vrot.lane.b32.xlu0 %v1700, 32
    %v1722 = vpop.permute.xlu0 %1721
    %1723 = vrot.lane.b32.xlu0 %v1701, 32
    %v1724 = vpop.permute.xlu0 %1723
    %1725 = vrot.lane.b32.xlu0 %v1702, 32
    %v1726 = vpop.permute.xlu0 %1725
    %v1735 = vmul.f32 %v1584, %v1712
    %v1736 = vmul.f32 %v1586, %v1714
    %v1737 = vmul.f32 %v1588, %v1716
    %v1738 = vmul.f32 %v1590, %v1718
    %v1739 = vmul.f32 %v1592, %v1720
    %v1740 = vmul.f32 %v1594, %v1722
    %v1741 = vmul.f32 %v1596, %v1724
    %v1742 = vmul.f32 %v1598, %v1726
    %v1743 = vld [vmem:[#allocation2 + $0x5] sm:$0x1]
    %v1744 = vld [vmem:[#allocation2 + $0xd] sm:$0x1]
    %v1745 = vld [vmem:[#allocation2 + $0x15] sm:$0x1]
    %v1746 = vld [vmem:[#allocation2 + $0x1d] sm:$0x1]
    %v1747 = vld [vmem:[#allocation2 + $0x25] sm:$0x1]
    %v1748 = vld [vmem:[#allocation2 + $0x2d] sm:$0x1]
    %v1749 = vld [vmem:[#allocation2 + $0x35] sm:$0x1]
    %v1750 = vld [vmem:[#allocation2 + $0x3d] sm:$0x1]
    %v1759 = vrot.slane %v1736, 7
    %v1760 = vsel %vm473, %v1759, %v1735
    %v1761 = vrot.slane %v1737, 6
    %v1762 = vsel %vm476, %v1761, %v1760
    %v1763 = vrot.slane %v1738, 5
    %v1764 = vsel %vm479, %v1763, %v1762
    %v1765 = vrot.slane %v1739, 4
    %v1766 = vsel %vm482, %v1765, %v1764
    %v1767 = vrot.slane %v1740, 3
    %v1768 = vsel %vm485, %v1767, %v1766
    %v1769 = vrot.slane %v1741, 2
    %v1770 = vsel %vm488, %v1769, %v1768
    %v1771 = vrot.slane %v1742, 1
    %v1772 = vsel %vm491, %v1771, %v1770
    %1773 = vrot.lane.b32.xlu0 %v1772, 64
    %v1774 = vpop.permute.xlu0 %1773
    %v1775 = vsel %vm166, %v1774, 0
    %1777 = vmatprep.subr.mxu0 0.0
    %1778 = vmatpush1.msra.mxu0 %v154
    %1779 = vmatprep.subr.mxu0 0.0
    %1780 = vmatpush1.msra.mxu0 %v155
    %1781 = vmatprep.subr.mxu0 0.0
    %1782 = vmatpush1.msra.mxu0 %v156
    %1783 = vmatprep.subr.mxu0 0.0
    %1784 = vmatpush1.msra.mxu0 %v157
    %1785 = vmatprep.subr.mxu0 0.0
    %1786 = vmatpush1.msra.mxu0 0.0
    %1787 = vmatprep.subr.mxu0 0.0
    %1788 = vmatpush1.msra.mxu0 0.0
    %1789 = vmatprep.subr.mxu0 0.0
    %1790 = vmatpush1.msra.mxu0 0.0
    %1791 = vmatprep.subr.mxu0 0.0
    %1792 = vmatpush1.msra.mxu0 0.0
    %1793 = vmatprep.subr.mxu0 0.0
    %1794 = vmatpush1.msra.mxu0 0.0
    %1795 = vmatprep.subr.mxu0 0.0
    %1796 = vmatpush1.msra.mxu0 0.0
    %1797 = vmatprep.subr.mxu0 0.0
    %1798 = vmatpush1.msra.mxu0 0.0
    %1799 = vmatprep.subr.mxu0 0.0
    %1800 = vmatpush1.msra.mxu0 0.0
    %1801 = vmatprep.subr.mxu0 0.0
    %1802 = vmatpush1.msra.mxu0 0.0
    %1803 = vmatprep.subr.mxu0 0.0
    %1804 = vmatpush1.msra.mxu0 0.0
    %1805 = vmatprep.subr.mxu0 0.0
    %1806 = vmatpush1.msra.mxu0 0.0
    %1807 = vmatprep.subr.mxu0 0.0
    %1808 = vmatpush1.msra.mxu0 0.0
    %1809 = vmatprep.subr.mxu0 0.0
    %1810 = vmatpush1.msra.mxu0 0.0
    %1811 = vmatprep.subr.mxu0 0.0
    %1812 = vmatpush1.msra.mxu0 0.0
    %1813 = vmatprep.subr.mxu0 0.0
    %1814 = vmatpush1.msra.mxu0 0.0
    %1815 = vmatprep.subr.mxu0 0.0
    %1816 = vmatpush1.msra.mxu0 0.0
    %1817 = vmatprep.subr.mxu0 0.0
    %1818 = vmatpush1.msra.mxu0 0.0
    %1819 = vmatprep.subr.mxu0 0.0
    %1820 = vmatpush1.msra.mxu0 0.0
    %1821 = vmatprep.subr.mxu0 0.0
    %1822 = vmatpush1.msra.mxu0 0.0
    %1823 = vmatprep.subr.mxu0 0.0
    %1824 = vmatpush1.msra.mxu0 0.0
    %1825 = vmatprep.subr.mxu0 0.0
    %1826 = vmatpush1.msra.mxu0 0.0
    %1827 = vmatprep.subr.mxu0 0.0
    %1828 = vmatpush1.msra.mxu0 0.0
    %1829 = vmatprep.subr.mxu0 0.0
    %1830 = vmatpush1.msra.mxu0 0.0
    %1831 = vmatprep.subr.mxu0 0.0
    %1832 = vmatpush1.msra.mxu0 0.0
    %1833 = vmatprep.subr.mxu0 0.0
    %1834 = vmatpush1.msra.mxu0 0.0
    %1835 = vmatprep.subr.mxu0 0.0
    %1836 = vmatpush1.msra.mxu0 0.0
    %1837 = vmatprep.subr.mxu0 0.0
    %1838 = vmatpush1.msra.mxu0 0.0
    %1839 = vmatprep.subr.mxu0 0.0
    %1840 = vmatpush1.msra.mxu0 0.0
    %1841 = vmatprep.mubr.f32.mxu0 0.0
    %1842 = vmatmul.mubr.f32.gmra.mrb[0].mxu0 %v1775
    %v1843 = vpop.f32.mrb[0].mxu0
    %v1844 = vadd.f32 0.0, %v1843
    %v1845 = vpop.f32.mrb[0].mxu0
    %1846 = vdwg.mxu0
    %v1848 = vrot.slane %v1844, 1
    %v1849 = vrot.slane %v1844, 2
    %v1850 = vrot.slane %v1844, 3
    %v1851 = vrot.slane %v1844, 4
    %v1852 = vrot.slane %v1844, 5
    %v1853 = vrot.slane %v1844, 6
    %v1854 = vrot.slane %v1844, 7
    %v1863 = vadd.f32 %v1743, %v1844
    %v1864 = vadd.f32 %v1744, %v1848
    %v1865 = vadd.f32 %v1745, %v1849
    %v1866 = vadd.f32 %v1746, %v1850
    %v1867 = vadd.f32 %v1747, %v1851
    %v1868 = vadd.f32 %v1748, %v1852
    %v1869 = vadd.f32 %v1749, %v1853
    %v1870 = vadd.f32 %v1750, %v1854
    %v1871 = vxor.u32 %v1863, 2147483648
    %v1872 = vxor.u32 %v1864, 2147483648
    %v1873 = vxor.u32 %v1865, 2147483648
    %v1874 = vxor.u32 %v1866, 2147483648
    %v1875 = vxor.u32 %v1867, 2147483648
    %v1876 = vxor.u32 %v1868, 2147483648
    %v1877 = vxor.u32 %v1869, 2147483648
    %v1878 = vxor.u32 %v1870, 2147483648
    %v1879 = vmul.f32 %v1871, 1.442695
    %v1880 = vpow.pop %v1879
    %v1881 = vmul.f32 %v1872, 1.442695
    %v1882 = vpow.pop %v1881
    %v1883 = vmul.f32 %v1873, 1.442695
    %v1884 = vpow.pop %v1883
    %v1885 = vmul.f32 %v1874, 1.442695
    %v1886 = vpow.pop %v1885
    %v1887 = vmul.f32 %v1875, 1.442695
    %v1888 = vpow.pop %v1887
    %v1889 = vmul.f32 %v1876, 1.442695
    %v1890 = vpow.pop %v1889
    %v1891 = vmul.f32 %v1877, 1.442695
    %v1892 = vpow.pop %v1891
    %v1893 = vmul.f32 %v1878, 1.442695
    %v1894 = vpow.pop %v1893
    %v1895 = vadd.f32 %v1880, 1.0
    %v1896 = vadd.f32 %v1882, 1.0
    %v1897 = vadd.f32 %v1884, 1.0
    %v1898 = vadd.f32 %v1886, 1.0
    %v1899 = vadd.f32 %v1888, 1.0
    %v1900 = vadd.f32 %v1890, 1.0
    %v1901 = vadd.f32 %v1892, 1.0
    %v1902 = vadd.f32 %v1894, 1.0
    %v1903 = vrcp.pop %v1895
    %v1904 = vmul.f32 1.0, %v1903
    %v1905 = vrcp.pop %v1896
    %v1906 = vmul.f32 1.0, %v1905
    %v1907 = vrcp.pop %v1897
    %v1908 = vmul.f32 1.0, %v1907
    %v1909 = vrcp.pop %v1898
    %v1910 = vmul.f32 1.0, %v1909
    %v1911 = vrcp.pop %v1899
    %v1912 = vmul.f32 1.0, %v1911
    %v1913 = vrcp.pop %v1900
    %v1914 = vmul.f32 1.0, %v1913
    %v1915 = vrcp.pop %v1901
    %v1916 = vmul.f32 1.0, %v1915
    %v1917 = vrcp.pop %v1902
    %v1918 = vmul.f32 1.0, %v1917
    %v1919 = vtanh.pop %v1863
    %v1920 = vtanh.pop %v1864
    %v1921 = vtanh.pop %v1865
    %v1922 = vtanh.pop %v1866
    %v1923 = vtanh.pop %v1867
    %v1924 = vtanh.pop %v1868
    %v1925 = vtanh.pop %v1869
    %v1926 = vtanh.pop %v1870
    %v1927 = vmul.f32 %v1904, %v1687
    %v1928 = vmul.f32 %v1906, %v1688
    %v1929 = vmul.f32 %v1908, %v1689
    %v1930 = vmul.f32 %v1910, %v1690
    %v1931 = vmul.f32 %v1912, %v1691
    %v1932 = vmul.f32 %v1914, %v1692
    %v1933 = vmul.f32 %v1916, %v1693
    %v1934 = vmul.f32 %v1918, %v1694
    %1943 = vrot.lane.b32.xlu0 %v1919, 32
    %v1944 = vpop.permute.xlu0 %1943
    %1945 = vrot.lane.b32.xlu0 %v1920, 32
    %v1946 = vpop.permute.xlu0 %1945
    %1947 = vrot.lane.b32.xlu0 %v1921, 32
    %v1948 = vpop.permute.xlu0 %1947
    %1949 = vrot.lane.b32.xlu0 %v1922, 32
    %v1950 = vpop.permute.xlu0 %1949
    %1951 = vrot.lane.b32.xlu0 %v1923, 32
    %v1952 = vpop.permute.xlu0 %1951
    %1953 = vrot.lane.b32.xlu0 %v1924, 32
    %v1954 = vpop.permute.xlu0 %1953
    %1955 = vrot.lane.b32.xlu0 %v1925, 32
    %v1956 = vpop.permute.xlu0 %1955
    %1957 = vrot.lane.b32.xlu0 %v1926, 32
    %v1958 = vpop.permute.xlu0 %1957
    %v1967 = vmul.f32 %v1904, %v1944
    %v1968 = vmul.f32 %v1906, %v1946
    %v1969 = vmul.f32 %v1908, %v1948
    %v1970 = vmul.f32 %v1910, %v1950
    %v1971 = vmul.f32 %v1912, %v1952
    %v1972 = vmul.f32 %v1914, %v1954
    %v1973 = vmul.f32 %v1916, %v1956
    %v1974 = vmul.f32 %v1918, %v1958
    %1983 = vrot.lane.b32.xlu0 %v1967, 32
    %v1984 = vpop.permute.xlu0 %1983
    %1985 = vrot.lane.b32.xlu0 %v1968, 32
    %v1986 = vpop.permute.xlu0 %1985
    %1987 = vrot.lane.b32.xlu0 %v1969, 32
    %v1988 = vpop.permute.xlu0 %1987
    %1989 = vrot.lane.b32.xlu0 %v1970, 32
    %v1990 = vpop.permute.xlu0 %1989
    %1991 = vrot.lane.b32.xlu0 %v1971, 32
    %v1992 = vpop.permute.xlu0 %1991
    %1993 = vrot.lane.b32.xlu0 %v1972, 32
    %v1994 = vpop.permute.xlu0 %1993
    %1995 = vrot.lane.b32.xlu0 %v1973, 32
    %v1996 = vpop.permute.xlu0 %1995
    %1997 = vrot.lane.b32.xlu0 %v1974, 32
    %v1998 = vpop.permute.xlu0 %1997
    %v2007 = vadd.f32 %v1927, %v1984
    %v2008 = vadd.f32 %v1928, %v1986
    %v2009 = vadd.f32 %v1929, %v1988
    %v2010 = vadd.f32 %v1930, %v1990
    %v2011 = vadd.f32 %v1931, %v1992
    %v2012 = vadd.f32 %v1932, %v1994
    %v2013 = vadd.f32 %v1933, %v1996
    %v2014 = vadd.f32 %v1934, %v1998
    %v2015 = vtanh.pop %v2007
    %v2016 = vtanh.pop %v2008
    %v2017 = vtanh.pop %v2009
    %v2018 = vtanh.pop %v2010
    %v2019 = vtanh.pop %v2011
    %v2020 = vtanh.pop %v2012
    %v2021 = vtanh.pop %v2013
    %v2022 = vtanh.pop %v2014
    %2031 = vrot.lane.b32.xlu0 %v2015, 32
    %v2032 = vpop.permute.xlu0 %2031
    %2033 = vrot.lane.b32.xlu0 %v2016, 32
    %v2034 = vpop.permute.xlu0 %2033
    %2035 = vrot.lane.b32.xlu0 %v2017, 32
    %v2036 = vpop.permute.xlu0 %2035
    %2037 = vrot.lane.b32.xlu0 %v2018, 32
    %v2038 = vpop.permute.xlu0 %2037
    %2039 = vrot.lane.b32.xlu0 %v2019, 32
    %v2040 = vpop.permute.xlu0 %2039
    %2041 = vrot.lane.b32.xlu0 %v2020, 32
    %v2042 = vpop.permute.xlu0 %2041
    %2043 = vrot.lane.b32.xlu0 %v2021, 32
    %v2044 = vpop.permute.xlu0 %2043
    %2045 = vrot.lane.b32.xlu0 %v2022, 32
    %v2046 = vpop.permute.xlu0 %2045
    %v2055 = vmul.f32 %v1904, %v2032
    %v2056 = vmul.f32 %v1906, %v2034
    %v2057 = vmul.f32 %v1908, %v2036
    %v2058 = vmul.f32 %v1910, %v2038
    %v2059 = vmul.f32 %v1912, %v2040
    %v2060 = vmul.f32 %v1914, %v2042
    %v2061 = vmul.f32 %v1916, %v2044
    %v2062 = vmul.f32 %v1918, %v2046
    %v2063 = vld [vmem:[#allocation2 + $0x6] sm:$0x1]
    %v2064 = vld [vmem:[#allocation2 + $0xe] sm:$0x1]
    %v2065 = vld [vmem:[#allocation2 + $0x16] sm:$0x1]
    %v2066 = vld [vmem:[#allocation2 + $0x1e] sm:$0x1]
    %v2067 = vld [vmem:[#allocation2 + $0x26] sm:$0x1]
    %v2068 = vld [vmem:[#allocation2 + $0x2e] sm:$0x1]
    %v2069 = vld [vmem:[#allocation2 + $0x36] sm:$0x1]
    %v2070 = vld [vmem:[#allocation2 + $0x3e] sm:$0x1]
    %v2079 = vrot.slane %v2056, 7
    %v2080 = vsel %vm473, %v2079, %v2055
    %v2081 = vrot.slane %v2057, 6
    %v2082 = vsel %vm476, %v2081, %v2080
    %v2083 = vrot.slane %v2058, 5
    %v2084 = vsel %vm479, %v2083, %v2082
    %v2085 = vrot.slane %v2059, 4
    %v2086 = vsel %vm482, %v2085, %v2084
    %v2087 = vrot.slane %v2060, 3
    %v2088 = vsel %vm485, %v2087, %v2086
    %v2089 = vrot.slane %v2061, 2
    %v2090 = vsel %vm488, %v2089, %v2088
    %v2091 = vrot.slane %v2062, 1
    %v2092 = vsel %vm491, %v2091, %v2090
    %2093 = vrot.lane.b32.xlu0 %v2092, 64
    %v2094 = vpop.permute.xlu0 %2093
    %v2095 = vsel %vm166, %v2094, 0
    %2097 = vmatprep.subr.mxu0 0.0
    %2098 = vmatpush1.msra.mxu0 %v154
    %2099 = vmatprep.subr.mxu0 0.0
    %2100 = vmatpush1.msra.mxu0 %v155
    %2101 = vmatprep.subr.mxu0 0.0
    %2102 = vmatpush1.msra.mxu0 %v156
    %2103 = vmatprep.subr.mxu0 0.0
    %2104 = vmatpush1.msra.mxu0 %v157
    %2105 = vmatprep.subr.mxu0 0.0
    %2106 = vmatpush1.msra.mxu0 0.0
    %2107 = vmatprep.subr.mxu0 0.0
    %2108 = vmatpush1.msra.mxu0 0.0
    %2109 = vmatprep.subr.mxu0 0.0
    %2110 = vmatpush1.msra.mxu0 0.0
    %2111 = vmatprep.subr.mxu0 0.0
    %2112 = vmatpush1.msra.mxu0 0.0
    %2113 = vmatprep.subr.mxu0 0.0
    %2114 = vmatpush1.msra.mxu0 0.0
    %2115 = vmatprep.subr.mxu0 0.0
    %2116 = vmatpush1.msra.mxu0 0.0
    %2117 = vmatprep.subr.mxu0 0.0
    %2118 = vmatpush1.msra.mxu0 0.0
    %2119 = vmatprep.subr.mxu0 0.0
    %2120 = vmatpush1.msra.mxu0 0.0
    %2121 = vmatprep.subr.mxu0 0.0
    %2122 = vmatpush1.msra.mxu0 0.0
    %2123 = vmatprep.subr.mxu0 0.0
    %2124 = vmatpush1.msra.mxu0 0.0
    %2125 = vmatprep.subr.mxu0 0.0
    %2126 = vmatpush1.msra.mxu0 0.0
    %2127 = vmatprep.subr.mxu0 0.0
    %2128 = vmatpush1.msra.mxu0 0.0
    %2129 = vmatprep.subr.mxu0 0.0
    %2130 = vmatpush1.msra.mxu0 0.0
    %2131 = vmatprep.subr.mxu0 0.0
    %2132 = vmatpush1.msra.mxu0 0.0
    %2133 = vmatprep.subr.mxu0 0.0
    %2134 = vmatpush1.msra.mxu0 0.0
    %2135 = vmatprep.subr.mxu0 0.0
    %2136 = vmatpush1.msra.mxu0 0.0
    %2137 = vmatprep.subr.mxu0 0.0
    %2138 = vmatpush1.msra.mxu0 0.0
    %2139 = vmatprep.subr.mxu0 0.0
    %2140 = vmatpush1.msra.mxu0 0.0
    %2141 = vmatprep.subr.mxu0 0.0
    %2142 = vmatpush1.msra.mxu0 0.0
    %2143 = vmatprep.subr.mxu0 0.0
    %2144 = vmatpush1.msra.mxu0 0.0
    %2145 = vmatprep.subr.mxu0 0.0
    %2146 = vmatpush1.msra.mxu0 0.0
    %2147 = vmatprep.subr.mxu0 0.0
    %2148 = vmatpush1.msra.mxu0 0.0
    %2149 = vmatprep.subr.mxu0 0.0
    %2150 = vmatpush1.msra.mxu0 0.0
    %2151 = vmatprep.subr.mxu0 0.0
    %2152 = vmatpush1.msra.mxu0 0.0
    %2153 = vmatprep.subr.mxu0 0.0
    %2154 = vmatpush1.msra.mxu0 0.0
    %2155 = vmatprep.subr.mxu0 0.0
    %2156 = vmatpush1.msra.mxu0 0.0
    %2157 = vmatprep.subr.mxu0 0.0
    %2158 = vmatpush1.msra.mxu0 0.0
    %2159 = vmatprep.subr.mxu0 0.0
    %2160 = vmatpush1.msra.mxu0 0.0
    %2161 = vmatprep.mubr.f32.mxu0 0.0
    %2162 = vmatmul.mubr.f32.gmra.mrb[0].mxu0 %v2095
    %v2163 = vpop.f32.mrb[0].mxu0
    %v2164 = vadd.f32 0.0, %v2163
    %v2165 = vpop.f32.mrb[0].mxu0
    %2166 = vdwg.mxu0
    %v2168 = vrot.slane %v2164, 1
    %v2169 = vrot.slane %v2164, 2
    %v2170 = vrot.slane %v2164, 3
    %v2171 = vrot.slane %v2164, 4
    %v2172 = vrot.slane %v2164, 5
    %v2173 = vrot.slane %v2164, 6
    %v2174 = vrot.slane %v2164, 7
    %v2183 = vadd.f32 %v2063, %v2164
    %v2184 = vadd.f32 %v2064, %v2168
    %v2185 = vadd.f32 %v2065, %v2169
    %v2186 = vadd.f32 %v2066, %v2170
    %v2187 = vadd.f32 %v2067, %v2171
    %v2188 = vadd.f32 %v2068, %v2172
    %v2189 = vadd.f32 %v2069, %v2173
    %v2190 = vadd.f32 %v2070, %v2174
    %v2191 = vxor.u32 %v2183, 2147483648
    %v2192 = vxor.u32 %v2184, 2147483648
    %v2193 = vxor.u32 %v2185, 2147483648
    %v2194 = vxor.u32 %v2186, 2147483648
    %v2195 = vxor.u32 %v2187, 2147483648
    %v2196 = vxor.u32 %v2188, 2147483648
    %v2197 = vxor.u32 %v2189, 2147483648
    %v2198 = vxor.u32 %v2190, 2147483648
    %v2199 = vmul.f32 %v2191, 1.442695
    %v2200 = vpow.pop %v2199
    %v2201 = vmul.f32 %v2192, 1.442695
    %v2202 = vpow.pop %v2201
    %v2203 = vmul.f32 %v2193, 1.442695
    %v2204 = vpow.pop %v2203
    %v2205 = vmul.f32 %v2194, 1.442695
    %v2206 = vpow.pop %v2205
    %v2207 = vmul.f32 %v2195, 1.442695
    %v2208 = vpow.pop %v2207
    %v2209 = vmul.f32 %v2196, 1.442695
    %v2210 = vpow.pop %v2209
    %v2211 = vmul.f32 %v2197, 1.442695
    %v2212 = vpow.pop %v2211
    %v2213 = vmul.f32 %v2198, 1.442695
    %v2214 = vpow.pop %v2213
    %v2215 = vadd.f32 %v2200, 1.0
    %v2216 = vadd.f32 %v2202, 1.0
    %v2217 = vadd.f32 %v2204, 1.0
    %v2218 = vadd.f32 %v2206, 1.0
    %v2219 = vadd.f32 %v2208, 1.0
    %v2220 = vadd.f32 %v2210, 1.0
    %v2221 = vadd.f32 %v2212, 1.0
    %v2222 = vadd.f32 %v2214, 1.0
    %v2223 = vrcp.pop %v2215
    %v2224 = vmul.f32 1.0, %v2223
    %v2225 = vrcp.pop %v2216
    %v2226 = vmul.f32 1.0, %v2225
    %v2227 = vrcp.pop %v2217
    %v2228 = vmul.f32 1.0, %v2227
    %v2229 = vrcp.pop %v2218
    %v2230 = vmul.f32 1.0, %v2229
    %v2231 = vrcp.pop %v2219
    %v2232 = vmul.f32 1.0, %v2231
    %v2233 = vrcp.pop %v2220
    %v2234 = vmul.f32 1.0, %v2233
    %v2235 = vrcp.pop %v2221
    %v2236 = vmul.f32 1.0, %v2235
    %v2237 = vrcp.pop %v2222
    %v2238 = vmul.f32 1.0, %v2237
    %v2239 = vtanh.pop %v2183
    %v2240 = vtanh.pop %v2184
    %v2241 = vtanh.pop %v2185
    %v2242 = vtanh.pop %v2186
    %v2243 = vtanh.pop %v2187
    %v2244 = vtanh.pop %v2188
    %v2245 = vtanh.pop %v2189
    %v2246 = vtanh.pop %v2190
    %v2247 = vmul.f32 %v2224, %v2007
    %v2248 = vmul.f32 %v2226, %v2008
    %v2249 = vmul.f32 %v2228, %v2009
    %v2250 = vmul.f32 %v2230, %v2010
    %v2251 = vmul.f32 %v2232, %v2011
    %v2252 = vmul.f32 %v2234, %v2012
    %v2253 = vmul.f32 %v2236, %v2013
    %v2254 = vmul.f32 %v2238, %v2014
    %2263 = vrot.lane.b32.xlu0 %v2239, 32
    %v2264 = vpop.permute.xlu0 %2263
    %2265 = vrot.lane.b32.xlu0 %v2240, 32
    %v2266 = vpop.permute.xlu0 %2265
    %2267 = vrot.lane.b32.xlu0 %v2241, 32
    %v2268 = vpop.permute.xlu0 %2267
    %2269 = vrot.lane.b32.xlu0 %v2242, 32
    %v2270 = vpop.permute.xlu0 %2269
    %2271 = vrot.lane.b32.xlu0 %v2243, 32
    %v2272 = vpop.permute.xlu0 %2271
    %2273 = vrot.lane.b32.xlu0 %v2244, 32
    %v2274 = vpop.permute.xlu0 %2273
    %2275 = vrot.lane.b32.xlu0 %v2245, 32
    %v2276 = vpop.permute.xlu0 %2275
    %2277 = vrot.lane.b32.xlu0 %v2246, 32
    %v2278 = vpop.permute.xlu0 %2277
    %v2287 = vmul.f32 %v2224, %v2264
    %v2288 = vmul.f32 %v2226, %v2266
    %v2289 = vmul.f32 %v2228, %v2268
    %v2290 = vmul.f32 %v2230, %v2270
    %v2291 = vmul.f32 %v2232, %v2272
    %v2292 = vmul.f32 %v2234, %v2274
    %v2293 = vmul.f32 %v2236, %v2276
    %v2294 = vmul.f32 %v2238, %v2278
    %2303 = vrot.lane.b32.xlu0 %v2287, 32
    %v2304 = vpop.permute.xlu0 %2303
    %2305 = vrot.lane.b32.xlu0 %v2288, 32
    %v2306 = vpop.permute.xlu0 %2305
    %2307 = vrot.lane.b32.xlu0 %v2289, 32
    %v2308 = vpop.permute.xlu0 %2307
    %2309 = vrot.lane.b32.xlu0 %v2290, 32
    %v2310 = vpop.permute.xlu0 %2309
    %2311 = vrot.lane.b32.xlu0 %v2291, 32
    %v2312 = vpop.permute.xlu0 %2311
    %2313 = vrot.lane.b32.xlu0 %v2292, 32
    %v2314 = vpop.permute.xlu0 %2313
    %2315 = vrot.lane.b32.xlu0 %v2293, 32
    %v2316 = vpop.permute.xlu0 %2315
    %2317 = vrot.lane.b32.xlu0 %v2294, 32
    %v2318 = vpop.permute.xlu0 %2317
    %v2327 = vadd.f32 %v2247, %v2304
    %v2328 = vadd.f32 %v2248, %v2306
    %v2329 = vadd.f32 %v2249, %v2308
    %v2330 = vadd.f32 %v2250, %v2310
    %v2331 = vadd.f32 %v2251, %v2312
    %v2332 = vadd.f32 %v2252, %v2314
    %v2333 = vadd.f32 %v2253, %v2316
    %v2334 = vadd.f32 %v2254, %v2318
    %v2335 = vtanh.pop %v2327
    %v2336 = vtanh.pop %v2328
    %v2337 = vtanh.pop %v2329
    %v2338 = vtanh.pop %v2330
    %v2339 = vtanh.pop %v2331
    %v2340 = vtanh.pop %v2332
    %v2341 = vtanh.pop %v2333
    %v2342 = vtanh.pop %v2334
    %2351 = vrot.lane.b32.xlu0 %v2335, 32
    %v2352 = vpop.permute.xlu0 %2351
    %2353 = vrot.lane.b32.xlu0 %v2336, 32
    %v2354 = vpop.permute.xlu0 %2353
    %2355 = vrot.lane.b32.xlu0 %v2337, 32
    %v2356 = vpop.permute.xlu0 %2355
    %2357 = vrot.lane.b32.xlu0 %v2338, 32
    %v2358 = vpop.permute.xlu0 %2357
    %2359 = vrot.lane.b32.xlu0 %v2339, 32
    %v2360 = vpop.permute.xlu0 %2359
    %2361 = vrot.lane.b32.xlu0 %v2340, 32
    %v2362 = vpop.permute.xlu0 %2361
    %2363 = vrot.lane.b32.xlu0 %v2341, 32
    %v2364 = vpop.permute.xlu0 %2363
    %2365 = vrot.lane.b32.xlu0 %v2342, 32
    %v2366 = vpop.permute.xlu0 %2365
    %v2375 = vmul.f32 %v2224, %v2352
    %v2376 = vmul.f32 %v2226, %v2354
    %v2377 = vmul.f32 %v2228, %v2356
    %v2378 = vmul.f32 %v2230, %v2358
    %v2379 = vmul.f32 %v2232, %v2360
    %v2380 = vmul.f32 %v2234, %v2362
    %v2381 = vmul.f32 %v2236, %v2364
    %v2382 = vmul.f32 %v2238, %v2366
    %v2383 = vld [vmem:[#allocation2 + $0x7] sm:$0x1]
    %v2384 = vld [vmem:[#allocation2 + $0xf] sm:$0x1]
    %v2385 = vld [vmem:[#allocation2 + $0x17] sm:$0x1]
    %v2386 = vld [vmem:[#allocation2 + $0x1f] sm:$0x1]
    %v2387 = vld [vmem:[#allocation2 + $0x27] sm:$0x1]
    %v2388 = vld [vmem:[#allocation2 + $0x2f] sm:$0x1]
    %v2389 = vld [vmem:[#allocation2 + $0x37] sm:$0x1]
    %v2390 = vld [vmem:[#allocation2 + $0x3f] sm:$0x1]
    %v2399 = vrot.slane %v2376, 7
    %v2400 = vsel %vm473, %v2399, %v2375
    %v2401 = vrot.slane %v2377, 6
    %v2402 = vsel %vm476, %v2401, %v2400
    %v2403 = vrot.slane %v2378, 5
    %v2404 = vsel %vm479, %v2403, %v2402
    %v2405 = vrot.slane %v2379, 4
    %v2406 = vsel %vm482, %v2405, %v2404
    %v2407 = vrot.slane %v2380, 3
    %v2408 = vsel %vm485, %v2407, %v2406
    %v2409 = vrot.slane %v2381, 2
    %v2410 = vsel %vm488, %v2409, %v2408
    %v2411 = vrot.slane %v2382, 1
    %v2412 = vsel %vm491, %v2411, %v2410
    %2413 = vrot.lane.b32.xlu0 %v2412, 64
    %v2414 = vpop.permute.xlu0 %2413
    %v2415 = vsel %vm166, %v2414, 0
    %2417 = vmatprep.subr.mxu0 0.0
    %2418 = vmatpush1.msra.mxu0 %v154
    %2419 = vmatprep.subr.mxu0 0.0
    %2420 = vmatpush1.msra.mxu0 %v155
    %2421 = vmatprep.subr.mxu0 0.0
    %2422 = vmatpush1.msra.mxu0 %v156
    %2423 = vmatprep.subr.mxu0 0.0
    %2424 = vmatpush1.msra.mxu0 %v157
    %2425 = vmatprep.subr.mxu0 0.0
    %2426 = vmatpush1.msra.mxu0 0.0
    %2427 = vmatprep.subr.mxu0 0.0
    %2428 = vmatpush1.msra.mxu0 0.0
    %2429 = vmatprep.subr.mxu0 0.0
    %2430 = vmatpush1.msra.mxu0 0.0
    %2431 = vmatprep.subr.mxu0 0.0
    %2432 = vmatpush1.msra.mxu0 0.0
    %2433 = vmatprep.subr.mxu0 0.0
    %2434 = vmatpush1.msra.mxu0 0.0
    %2435 = vmatprep.subr.mxu0 0.0
    %2436 = vmatpush1.msra.mxu0 0.0
    %2437 = vmatprep.subr.mxu0 0.0
    %2438 = vmatpush1.msra.mxu0 0.0
    %2439 = vmatprep.subr.mxu0 0.0
    %2440 = vmatpush1.msra.mxu0 0.0
    %2441 = vmatprep.subr.mxu0 0.0
    %2442 = vmatpush1.msra.mxu0 0.0
    %2443 = vmatprep.subr.mxu0 0.0
    %2444 = vmatpush1.msra.mxu0 0.0
    %2445 = vmatprep.subr.mxu0 0.0
    %2446 = vmatpush1.msra.mxu0 0.0
    %2447 = vmatprep.subr.mxu0 0.0
    %2448 = vmatpush1.msra.mxu0 0.0
    %2449 = vmatprep.subr.mxu0 0.0
    %2450 = vmatpush1.msra.mxu0 0.0
    %2451 = vmatprep.subr.mxu0 0.0
    %2452 = vmatpush1.msra.mxu0 0.0
    %2453 = vmatprep.subr.mxu0 0.0
    %2454 = vmatpush1.msra.mxu0 0.0
    %2455 = vmatprep.subr.mxu0 0.0
    %2456 = vmatpush1.msra.mxu0 0.0
    %2457 = vmatprep.subr.mxu0 0.0
    %2458 = vmatpush1.msra.mxu0 0.0
    %2459 = vmatprep.subr.mxu0 0.0
    %2460 = vmatpush1.msra.mxu0 0.0
    %2461 = vmatprep.subr.mxu0 0.0
    %2462 = vmatpush1.msra.mxu0 0.0
    %2463 = vmatprep.subr.mxu0 0.0
    %2464 = vmatpush1.msra.mxu0 0.0
    %2465 = vmatprep.subr.mxu0 0.0
    %2466 = vmatpush1.msra.mxu0 0.0
    %2467 = vmatprep.subr.mxu0 0.0
    %2468 = vmatpush1.msra.mxu0 0.0
    %2469 = vmatprep.subr.mxu0 0.0
    %2470 = vmatpush1.msra.mxu0 0.0
    %2471 = vmatprep.subr.mxu0 0.0
    %2472 = vmatpush1.msra.mxu0 0.0
    %2473 = vmatprep.subr.mxu0 0.0
    %2474 = vmatpush1.msra.mxu0 0.0
    %2475 = vmatprep.subr.mxu0 0.0
    %2476 = vmatpush1.msra.mxu0 0.0
    %2477 = vmatprep.subr.mxu0 0.0
    %2478 = vmatpush1.msra.mxu0 0.0
    %2479 = vmatprep.subr.mxu0 0.0
    %2480 = vmatpush1.msra.mxu0 0.0
    %2481 = vmatprep.mubr.f32.mxu0 0.0
    %2482 = vmatmul.mubr.f32.gmra.mrb[0].mxu0 %v2415
    %v2483 = vpop.f32.mrb[0].mxu0
    %v2484 = vadd.f32 0.0, %v2483
    %v2485 = vpop.f32.mrb[0].mxu0
    %2486 = vdwg.mxu0
    %v2488 = vrot.slane %v2484, 1
    %v2489 = vrot.slane %v2484, 2
    %v2490 = vrot.slane %v2484, 3
    %v2491 = vrot.slane %v2484, 4
    %v2492 = vrot.slane %v2484, 5
    %v2493 = vrot.slane %v2484, 6
    %v2494 = vrot.slane %v2484, 7
    %v2503 = vadd.f32 %v2383, %v2484
    %v2504 = vadd.f32 %v2384, %v2488
    %v2505 = vadd.f32 %v2385, %v2489
    %v2506 = vadd.f32 %v2386, %v2490
    %v2507 = vadd.f32 %v2387, %v2491
    %v2508 = vadd.f32 %v2388, %v2492
    %v2509 = vadd.f32 %v2389, %v2493
    %v2510 = vadd.f32 %v2390, %v2494
    %v2511 = vxor.u32 %v2503, 2147483648
    %v2512 = vxor.u32 %v2504, 2147483648
    %v2513 = vxor.u32 %v2505, 2147483648
    %v2514 = vxor.u32 %v2506, 2147483648
    %v2515 = vxor.u32 %v2507, 2147483648
    %v2516 = vxor.u32 %v2508, 2147483648
    %v2517 = vxor.u32 %v2509, 2147483648
    %v2518 = vxor.u32 %v2510, 2147483648
    %v2519 = vmul.f32 %v2511, 1.442695
    %v2520 = vpow.pop %v2519
    %v2521 = vmul.f32 %v2512, 1.442695
    %v2522 = vpow.pop %v2521
    %v2523 = vmul.f32 %v2513, 1.442695
    %v2524 = vpow.pop %v2523
    %v2525 = vmul.f32 %v2514, 1.442695
    %v2526 = vpow.pop %v2525
    %v2527 = vmul.f32 %v2515, 1.442695
    %v2528 = vpow.pop %v2527
    %v2529 = vmul.f32 %v2516, 1.442695
    %v2530 = vpow.pop %v2529
    %v2531 = vmul.f32 %v2517, 1.442695
    %v2532 = vpow.pop %v2531
    %v2533 = vmul.f32 %v2518, 1.442695
    %v2534 = vpow.pop %v2533
    %v2535 = vadd.f32 %v2520, 1.0
    %v2536 = vadd.f32 %v2522, 1.0
    %v2537 = vadd.f32 %v2524, 1.0
    %v2538 = vadd.f32 %v2526, 1.0
    %v2539 = vadd.f32 %v2528, 1.0
    %v2540 = vadd.f32 %v2530, 1.0
    %v2541 = vadd.f32 %v2532, 1.0
    %v2542 = vadd.f32 %v2534, 1.0
    %v2543 = vrcp.pop %v2535
    %v2544 = vmul.f32 1.0, %v2543
    %v2545 = vrcp.pop %v2536
    %v2546 = vmul.f32 1.0, %v2545
    %v2547 = vrcp.pop %v2537
    %v2548 = vmul.f32 1.0, %v2547
    %v2549 = vrcp.pop %v2538
    %v2550 = vmul.f32 1.0, %v2549
    %v2551 = vrcp.pop %v2539
    %v2552 = vmul.f32 1.0, %v2551
    %v2553 = vrcp.pop %v2540
    %v2554 = vmul.f32 1.0, %v2553
    %v2555 = vrcp.pop %v2541
    %v2556 = vmul.f32 1.0, %v2555
    %v2557 = vrcp.pop %v2542
    %v2558 = vmul.f32 1.0, %v2557
    %v2559 = vtanh.pop %v2503
    %v2560 = vtanh.pop %v2504
    %v2561 = vtanh.pop %v2505
    %v2562 = vtanh.pop %v2506
    %v2563 = vtanh.pop %v2507
    %v2564 = vtanh.pop %v2508
    %v2565 = vtanh.pop %v2509
    %v2566 = vtanh.pop %v2510
    %v2567 = vmul.f32 %v2544, %v2327
    %v2568 = vmul.f32 %v2546, %v2328
    %v2569 = vmul.f32 %v2548, %v2329
    %v2570 = vmul.f32 %v2550, %v2330
    %v2571 = vmul.f32 %v2552, %v2331
    %v2572 = vmul.f32 %v2554, %v2332
    %v2573 = vmul.f32 %v2556, %v2333
    %v2574 = vmul.f32 %v2558, %v2334
    %2583 = vrot.lane.b32.xlu0 %v2559, 32
    %v2584 = vpop.permute.xlu0 %2583
    %2585 = vrot.lane.b32.xlu0 %v2560, 32
    %v2586 = vpop.permute.xlu0 %2585
    %2587 = vrot.lane.b32.xlu0 %v2561, 32
    %v2588 = vpop.permute.xlu0 %2587
    %2589 = vrot.lane.b32.xlu0 %v2562, 32
    %v2590 = vpop.permute.xlu0 %2589
    %2591 = vrot.lane.b32.xlu0 %v2563, 32
    %v2592 = vpop.permute.xlu0 %2591
    %2593 = vrot.lane.b32.xlu0 %v2564, 32
    %v2594 = vpop.permute.xlu0 %2593
    %2595 = vrot.lane.b32.xlu0 %v2565, 32
    %v2596 = vpop.permute.xlu0 %2595
    %2597 = vrot.lane.b32.xlu0 %v2566, 32
    %v2598 = vpop.permute.xlu0 %2597
    %v2607 = vmul.f32 %v2544, %v2584
    %v2608 = vmul.f32 %v2546, %v2586
    %v2609 = vmul.f32 %v2548, %v2588
    %v2610 = vmul.f32 %v2550, %v2590
    %v2611 = vmul.f32 %v2552, %v2592
    %v2612 = vmul.f32 %v2554, %v2594
    %v2613 = vmul.f32 %v2556, %v2596
    %v2614 = vmul.f32 %v2558, %v2598
    %2623 = vrot.lane.b32.xlu0 %v2607, 32
    %v2624 = vpop.permute.xlu0 %2623
    %2625 = vrot.lane.b32.xlu0 %v2608, 32
    %v2626 = vpop.permute.xlu0 %2625
    %2627 = vrot.lane.b32.xlu0 %v2609, 32
    %v2628 = vpop.permute.xlu0 %2627
    %2629 = vrot.lane.b32.xlu0 %v2610, 32
    %v2630 = vpop.permute.xlu0 %2629
    %2631 = vrot.lane.b32.xlu0 %v2611, 32
    %v2632 = vpop.permute.xlu0 %2631
    %2633 = vrot.lane.b32.xlu0 %v2612, 32
    %v2634 = vpop.permute.xlu0 %2633
    %2635 = vrot.lane.b32.xlu0 %v2613, 32
    %v2636 = vpop.permute.xlu0 %2635
    %2637 = vrot.lane.b32.xlu0 %v2614, 32
    %v2638 = vpop.permute.xlu0 %2637
    %v2647 = vadd.f32 %v2567, %v2624
    %v2648 = vadd.f32 %v2568, %v2626
    %v2649 = vadd.f32 %v2569, %v2628
    %v2650 = vadd.f32 %v2570, %v2630
    %v2651 = vadd.f32 %v2571, %v2632
    %v2652 = vadd.f32 %v2572, %v2634
    %v2653 = vadd.f32 %v2573, %v2636
    %v2654 = vadd.f32 %v2574, %v2638
    %v2655 = vtanh.pop %v2647
    %v2656 = vtanh.pop %v2648
    %v2657 = vtanh.pop %v2649
    %v2658 = vtanh.pop %v2650
    %v2659 = vtanh.pop %v2651
    %v2660 = vtanh.pop %v2652
    %v2661 = vtanh.pop %v2653
    %v2662 = vtanh.pop %v2654
    %2671 = vrot.lane.b32.xlu0 %v2655, 32
    %v2672 = vpop.permute.xlu0 %2671
    %2673 = vrot.lane.b32.xlu0 %v2656, 32
    %v2674 = vpop.permute.xlu0 %2673
    %2675 = vrot.lane.b32.xlu0 %v2657, 32
    %v2676 = vpop.permute.xlu0 %2675
    %2677 = vrot.lane.b32.xlu0 %v2658, 32
    %v2678 = vpop.permute.xlu0 %2677
    %2679 = vrot.lane.b32.xlu0 %v2659, 32
    %v2680 = vpop.permute.xlu0 %2679
    %2681 = vrot.lane.b32.xlu0 %v2660, 32
    %v2682 = vpop.permute.xlu0 %2681
    %2683 = vrot.lane.b32.xlu0 %v2661, 32
    %v2684 = vpop.permute.xlu0 %2683
    %2685 = vrot.lane.b32.xlu0 %v2662, 32
    %v2686 = vpop.permute.xlu0 %2685
    %v2695 = vmul.f32 %v2544, %v2672
    %v2696 = vmul.f32 %v2546, %v2674
    %v2697 = vmul.f32 %v2548, %v2676
    %v2698 = vmul.f32 %v2550, %v2678
    %v2699 = vmul.f32 %v2552, %v2680
    %v2700 = vmul.f32 %v2554, %v2682
    %v2701 = vmul.f32 %v2556, %v2684
    %v2702 = vmul.f32 %v2558, %v2686
    %v2711 = vrot.slane %v2696, 7
    %v2712 = vsel %vm473, %v2711, %v2695
    %v2713 = vrot.slane %v2697, 6
    %v2714 = vsel %vm476, %v2713, %v2712
    %v2715 = vrot.slane %v2698, 5
    %v2716 = vsel %vm479, %v2715, %v2714
    %v2717 = vrot.slane %v2699, 4
    %v2718 = vsel %vm482, %v2717, %v2716
    %v2719 = vrot.slane %v2700, 3
    %v2720 = vsel %vm485, %v2719, %v2718
    %v2721 = vrot.slane %v2701, 2
    %v2722 = vsel %vm488, %v2721, %v2720
    %v2723 = vrot.slane %v2702, 1
    %v2724 = vsel %vm491, %v2723, %v2722
    %2725 = vrot.lane.b32.xlu0 %v2724, 64
    %v2726 = vpop.permute.xlu0 %2725
    %2728 = vst.msk [vmem:[#allocation3] sm:$0xff] %vm166, %v2726
    // Predicated region
    $region18: #{ego_past_encoder.1} parent=1 // pred_check
      _
    $region19: #{ego_past_encoder.1} parent=1 // pred_check_branch
      %2730 = sbr.rel (0) target = $region21
    $region20: #{ego_past_encoder.1} parent=1 // pred_region
      %s2732 = ssub.s32 128, 128
      %2733 = vsyncadd [#allocation4], %s2732
      %s2735 = sshll.u32 [#allocation3], 4
      %s2736 = int_to_ptr.vmem [resolvable:$true] %s2735
      %2738 = dma.vmem_to_hbm [thread:$0]  %s2736, 128, %s4, [#allocation4]
    $region21: #{ego_past_encoder.1} parent=1 // pred_fallthru
      _
    // Predicated region
    $region22: #{ego_past_encoder.1} parent=1 // pred_check
      _
    $region23: #{ego_past_encoder.1} parent=1 // pred_check_branch
      %2740 = sbr.rel (0) target = $region25
    $region24: #{ego_past_encoder.1} parent=1 // pred_region
      %2741 = dma.done [#allocation4], 128
    $region25: #{ego_past_encoder.1} parent=1 // pred_fallthru
      _
    %2742 = vsyncpa [#allocation4], 1

</llo_original>
